<compile_context>
chip_gen: v5e
topology: v5e:2x2
jax: 0.10.0
libtpu: 0.0.40
codegen_flags: <defaults>
</compile_context>

<pallas_src>
import functools

import jax
import jax.numpy as jnp
from jax import lax
from jax.experimental import pallas as pl
from jax.experimental.pallas import tpu as pltpu


# ---------------------------------------------------------------------------
# Fused Bottleneck kernel (one grid step == one image, rows = H*W, lanes = C)
# ---------------------------------------------------------------------------
def _bottleneck_kernel(x_ref, w1_ref, b1_ref, w2_ref, b2_ref, w3_ref, b3_ref,
                       o_ref, *, H, W, dilation, compute_dtype):
    f32 = jnp.float32
    HW = H * W

    # ---- conv1 (1x1, BN scale folded into w1) + bias + ReLU -------------
    a = jnp.dot(x_ref[0].astype(compute_dtype), w1_ref[...],
                preferred_element_type=f32)                       # (HW, width)
    a = jnp.maximum(a + b1_ref[...], 0.0)

    width = a.shape[-1]
    a = a.astype(compute_dtype)                                   # cast ONCE

    # ---- conv2 (3x3, stride=1, dilation; groups folded into block-diag w2)
    # W-boundary masking hoisted out of the tap loop: one masked copy for the
    # dw=-dilation taps, one for dw=+dilation, reused across the 3 kh offsets.
    col = lax.broadcasted_iota(jnp.int32, (HW, 1), 0) % W         # source column
    zeros = jnp.zeros_like(a)
    a_l = jnp.where(col < (W - dilation), a, zeros)   # feeds dw = -dilation taps
    a_r = jnp.where(col >= dilation, a, zeros)        # feeds dw = +dilation taps

    # Zero-row pad emulates SAME padding for the H-boundary shifts; rounded up
    # to a multiple of 8 so every dh*W shifted slice start is sublane-aligned
    # (only the +/-dilation lane-row shifts remain misaligned).
    pad = ((dilation * (W + 1) + 7) // 8) * 8
    zp = jnp.zeros((pad, width), compute_dtype)

    def padded(v):
        return jnp.concatenate([zp, v, zp], axis=0)               # (HW+2p, width)

    src = (padded(a_l), padded(a), padded(a_r))                   # indexed by kw

    # In-VMEM im2col: concat the 9 shifted slices along the contraction axis
    # and run ONE K = 9*width matmul against the block-diagonal tap weights.
    parts = []
    for kh in range(3):
        for kw in range(3):
            off = pad + (kh - 1) * dilation * W + (kw - 1) * dilation
            parts.append(src[kw][off:off + HW, :])
    patches = jnp.concatenate(parts, axis=-1)                     # (HW, 9*width)

    b = jnp.dot(patches, w2_ref[...], preferred_element_type=f32)  # (HW, width)
    b = jnp.maximum(b + b2_ref[...], 0.0).astype(compute_dtype)

    # ---- conv3 (1x1) + bias + identity residual + ReLU ------------------
    c = jnp.dot(b, w3_ref[...], preferred_element_type=f32)       # (HW, Cout)
    c = c + b3_ref[...]
    # Re-read x for the residual instead of pinning the value loaded at the
    # top of the kernel (shrinks the live range across conv1-conv3).
    c = jnp.maximum(c + x_ref[0].astype(f32), 0.0)
    o_ref[0] = c.astype(o_ref.dtype)


# ---------------------------------------------------------------------------
# Glue: BN folding + fused forward wrapper
# ---------------------------------------------------------------------------
def fold_bn(gamma, beta, mean, var, eps=1e-5):
    scale = (gamma / jnp.sqrt(var + eps)).astype(jnp.float32)
    bias = (beta - mean * scale).astype(jnp.float32)
    return scale, bias


def bottleneck_forward(x_nchw, params, stride=1, dilation=1, groups=1,
                       compute_dtype=None, eps=1e-5):
    """Fused Bottleneck forward. x_nchw: (N, Cin, H, W) in PyTorch layout."""
    N, Cin, H, W = x_nchw.shape
    width = params["w1"].shape[0]
    Cout = params["w3"].shape[0]
    HW = H * W
    assert width % groups == 0
    # TODO(synk): `downsample` is an externally supplied nn.Module; only the
    # downsample=None configuration (stride=1, inplanes == planes*expansion,
    # identity residual) is implemented here.
    assert stride == 1 and Cin == Cout, \
        "identity residual requires the downsample=None configuration"

    # Default to bf16 matmul operands (native MXU path on v5e/v6e/v7x);
    # accumulation + epilogue stay f32 inside the kernel.
    if compute_dtype is None:
        compute_dtype = jnp.bfloat16
    compute_dtype = jnp.dtype(compute_dtype)

    # NCHW -> (N, H*W, C): channels on the TPU lane axis.
    # TODO(synk): callers that already hold NHWC activations can skip the two
    # layout transposes (entry/exit); they are the only non-fused HBM passes.
    x = jnp.transpose(x_nchw, (0, 2, 3, 1)).reshape(N, HW, Cin)

    # Eval-mode BatchNorm folded to per-channel scale/bias; scales fold into
    # the weight columns (f32, before the compute-dtype cast), biases stay f32.
    s1, b1 = fold_bn(params["g1"], params["b1"], params["m1"], params["v1"], eps)
    s2, b2 = fold_bn(params["g2"], params["b2"], params["m2"], params["v2"], eps)
    s3, b3 = fold_bn(params["g3"], params["b3"], params["m3"], params["v3"], eps)

    w1 = params["w1"][:, :, 0, 0].astype(jnp.float32).T * s1[None, :]   # (Cin, width)
    w3 = params["w3"][:, :, 0, 0].astype(jnp.float32).T * s3[None, :]   # (width, Cout)

    # conv2 weight -> block-diagonal per-tap (width x width) matrices, stacked
    # along K:  (9*width, width); row = t*width + input channel (group-major),
    # col = output channel (group-major).  No zero-filled per-group matmuls,
    # no lane slicing/concats in-kernel; weights are tiny and resident.
    cg = width // groups
    w2 = params["w2"].astype(jnp.float32).reshape(groups, cg, cg, 3, 3)  # g,co,ci,kh,kw
    w2 = jnp.transpose(w2, (3, 4, 0, 2, 1)).reshape(9, groups, cg, cg)   # t,g,ci,co
    eye = jnp.eye(groups, dtype=jnp.float32)
    w2 = jnp.einsum("tgio,gh->tgiho", w2, eye).reshape(9, width, width)
    w2 = (w2 * s2[None, None, :]).reshape(9 * width, width)

    w1 = w1.astype(compute_dtype)
    w2 = w2.astype(compute_dtype)
    w3 = w3.astype(compute_dtype)
    b1 = b1.reshape(1, width)
    b2 = b2.reshape(1, width)
    b3 = b3.reshape(1, Cout)

    kernel = functools.partial(_bottleneck_kernel, H=H, W=W, dilation=dilation,
                               compute_dtype=compute_dtype)

    # Advisory cost + VMEM sizing for the per-image working set.
    xisz = jnp.dtype(x_nchw.dtype).itemsize
    cisz = compute_dtype.itemsize
    pad = ((dilation * (W + 1) + 7) // 8) * 8
    flops = 2 * N * HW * (Cin * width + 9 * width * width + width * Cout)
    bytes_accessed = ((x.size + N * HW * Cout) * xisz
                      + (w1.size + w2.size + w3.size) * cisz
                      + 4 * (2 * width + Cout))
    working_set = (2 * 2 * HW * max(Cin, Cout) * xisz          # dbl-buffered x/out
                   + 3 * (HW + 2 * pad) * width * cisz         # 3 padded copies
                   + 9 * HW * width * cisz                     # im2col patches
                   + 3 * HW * max(width, Cout) * 4             # f32 intermediates
                   + 2 * (w1.size + w2.size + w3.size) * cisz)  # resident weights
    vmem_limit = int(min(100 * 2**20, max(32 * 2**20, 2 * working_set)))

    const2 = lambda n: (0, 0)

    # TODO(synk): for v7x (64 MiB VMEM) at full ResNet spatial sizes, add a
    # second grid axis over H-row tiles with a +/-dilation halo; the demo
    # shapes fit comfortably with one image per grid step.
    out = pl.pallas_call(
        kernel,
        out_shape=jax.ShapeDtypeStruct((N, HW, Cout), x_nchw.dtype),
        grid=(N,),
        in_specs=[
            pl.BlockSpec((1, HW, Cin), lambda n: (n, 0, 0)),     # x (per image)
            pl.BlockSpec((Cin, width), const2),                  # w1 (resident)
            pl.BlockSpec((1, width), const2),                    # bn1 bias
            pl.BlockSpec((9 * width, width), const2),            # w2 block-diag taps
            pl.BlockSpec((1, width), const2),                    # bn2 bias
            pl.BlockSpec((width, Cout), const2),                 # w3 (resident)
            pl.BlockSpec((1, Cout), const2),                     # bn3 bias
        ],
        out_specs=pl.BlockSpec((1, HW, Cout), lambda n: (n, 0, 0)),
        compiler_params=pltpu.CompilerParams(
            dimension_semantics=("parallel",),
            vmem_limit_bytes=vmem_limit),
        cost_estimate=pl.CostEstimate(flops=flops, transcendentals=0,
                                      bytes_accessed=bytes_accessed),
    )(x, w1, b1, w2, b2, w3, b3)

    out = out.reshape(N, H, W, Cout)
    return jnp.transpose(out, (0, 3, 1, 2))                      # NHWC -> NCHW


# ---------------------------------------------------------------------------
# Pure-JAX reference (mirrors the PyTorch forward, eval-mode BN)
# ---------------------------------------------------------------------------
def bottleneck_reference(x, p, stride=1, dilation=1, groups=1, eps=1e-5):
    def conv(x, w, stride=1, dilation=1, groups=1, padding=0):
        return lax.conv_general_dilated(
            x, w, (stride, stride), [(padding, padding)] * 2,
            rhs_dilation=(dilation, dilation),
            dimension_numbers=("NCHW", "OIHW", "NCHW"),
            feature_group_count=groups)

    def bn(x, g, b, m, v):
        s = g / jnp.sqrt(v + eps)
        return x * s[None, :, None, None] + (b - m * s)[None, :, None, None]

    out = jax.nn.relu(bn(conv(x, p["w1"]), p["g1"], p["b1"], p["m1"], p["v1"]))
    out = jax.nn.relu(bn(conv(out, p["w2"], stride, dilation, groups,
                              padding=dilation),
                         p["g2"], p["b2"], p["m2"], p["v2"]))
    out = bn(conv(out, p["w3"]), p["g3"], p["b3"], p["m3"], p["v3"])
    return jax.nn.relu(out + x)


# ---------------------------------------------------------------------------
# Deterministic parameter init (shapes from Bottleneck.__init__)
# ---------------------------------------------------------------------------
def init_params(key, inplanes, planes, groups=1, base_width=64):
    width = int(planes * (base_width / 64.0)) * groups
    Cout = planes * 4  # expansion = 4
    ks = jax.random.split(key, 6)

    def bn_params(k, c):
        k1, k2, k3, k4 = jax.random.split(k, 4)
        return (jax.random.uniform(k1, (c,), minval=0.5, maxval=1.5),  # gamma
                jax.random.normal(k2, (c,)) * 0.1,                      # beta
                jax.random.normal(k3, (c,)) * 0.1,                      # running_mean
                jax.random.uniform(k4, (c,), minval=0.5, maxval=1.5))   # running_var

    g1, b1, m1, v1 = bn_params(ks[3], width)
    g2, b2, m2, v2 = bn_params(ks[4], width)
    g3, b3, m3, v3 = bn_params(ks[5], Cout)
    return dict(
        w1=jax.random.normal(ks[0], (width, inplanes, 1, 1), jnp.float32) * 0.1,
        w2=jax.random.normal(ks[1], (width, width // groups, 3, 3), jnp.float32) * 0.1,
        w3=jax.random.normal(ks[2], (Cout, width, 1, 1), jnp.float32) * 0.1,
        g1=g1, b1=b1, m1=m1, v1=v1,
        g2=g2, b2=b2, m2=m2, v2=v2,
        g3=g3, b3=b3, m3=m3, v3=v3,
    )


if __name__ == "__main__":
    def run_case(case_key, inplanes, planes, groups, dilation, N, H, W,
                 compute_dtype=None, atol=1e-3, rtol=1e-3):
        kx, kp = jax.random.split(case_key)
        x = jax.random.normal(kx, (N, inplanes, H, W), dtype=jnp.float32)
        params = init_params(kp, inplanes, planes, groups=groups)
        out = bottleneck_forward(x, params, stride=1, dilation=dilation,
                                 groups=groups, compute_dtype=compute_dtype)
        out = jax.block_until_ready(out)
        ref = bottleneck_reference(x, params, stride=1, dilation=dilation,
                                   groups=groups)
        assert out.shape == ref.shape == (N, planes * 4, H, W)
        max_err = float(jnp.max(jnp.abs(out - ref)))
        assert jnp.allclose(out, ref, atol=atol, rtol=rtol), max_err
        return max_err

    k1, k2, k3 = jax.random.split(jax.random.PRNGKey(0), 3)
    # Strict f32 numerics check: groups=1, 128-wide (lane-dense) channels.
    run_case(k1, inplanes=128, planes=32, groups=1, dilation=1, N=2, H=16, W=16,
             compute_dtype=jnp.float32)
    # Grouped + dilated conv2 path (ResNeXt-style groups=2, dilation=2), f32.
    run_case(k2, inplanes=64, planes=16, groups=2, dilation=2, N=2, H=12, W=12,
             compute_dtype=jnp.float32)
    # Default path: bf16 MXU operands with f32 accumulate/epilogue; loose
    # tolerance is a structure/smoke check against the f32 reference.
    run_case(k3, inplanes=128, planes=32, groups=1, dilation=1, N=2, H=16, W=16,
             compute_dtype=None, atol=5e-1, rtol=1e-1)
    print("KERNEL_OK")
</pallas_src>

<mosaic_0001>
module attributes {stable_mosaic.version = 11 : i64} {
  func.func @_bottleneck_kernel(%arg0: i32, %arg1: memref<1x256x128xf32, #tpu.memory_space<vmem>>, %arg2: memref<128x32xf32, #tpu.memory_space<vmem>>, %arg3: memref<1x32xf32, #tpu.memory_space<vmem>>, %arg4: memref<288x32xf32, #tpu.memory_space<vmem>>, %arg5: memref<1x32xf32, #tpu.memory_space<vmem>>, %arg6: memref<32x128xf32, #tpu.memory_space<vmem>>, %arg7: memref<1x128xf32, #tpu.memory_space<vmem>>, %arg8: memref<1x256x128xf32, #tpu.memory_space<vmem>>) attributes {dimension_semantics = [#tpu.dimension_semantics<parallel>], iteration_bounds = array<i64: 2>, scalar_prefetch = 0 : i64, scratch_operands = 0 : i64, tpu.core_type = #tpu.core_type<tc>, window_params = [{transform_indices = @transform_0, window_bounds = array<i64: 1, 256, 128>}, {pipeline_mode = #tpu.pipeline_mode<synchronous>, transform_indices = @transform_1, window_bounds = array<i64: 128, 32>}, {pipeline_mode = #tpu.pipeline_mode<synchronous>, transform_indices = @transform_2, window_bounds = array<i64: 1, 32>}, {pipeline_mode = #tpu.pipeline_mode<synchronous>, transform_indices = @transform_3, window_bounds = array<i64: 288, 32>}, {pipeline_mode = #tpu.pipeline_mode<synchronous>, transform_indices = @transform_4, window_bounds = array<i64: 1, 32>}, {pipeline_mode = #tpu.pipeline_mode<synchronous>, transform_indices = @transform_5, window_bounds = array<i64: 32, 128>}, {pipeline_mode = #tpu.pipeline_mode<synchronous>, transform_indices = @transform_6, window_bounds = array<i64: 1, 128>}, {transform_indices = @transform_7, window_bounds = array<i64: 1, 256, 128>}]} {
    %c0 = arith.constant 0 : index
    %c0_0 = arith.constant 0 : index
    %c0_1 = arith.constant 0 : index
    %0 = vector.load %arg1[%c0, %c0_0, %c0_1] : memref<1x256x128xf32, #tpu.memory_space<vmem>>, vector<1x256x128xf32>
    %1 = vector.shape_cast %0 : vector<1x256x128xf32> to vector<256x128xf32>
    %c0_2 = arith.constant 0 : index
    %c0_3 = arith.constant 0 : index
    %2 = vector.load %arg2[%c0_2, %c0_3] : memref<128x32xf32, #tpu.memory_space<vmem>>, vector<128x32xf32>
    %cst = arith.constant dense<0.000000e+00> : vector<256x32xf32>
    %3 = tpu.matmul %1, %2, %cst {dimension_numbers = #tpu.dot_dimension_numbers<[1], [0], [0], [1], [0, 0, 1, 1], [], []>} : vector<256x128xf32>, vector<128x32xf32>, vector<256x32xf32> -> vector<256x32xf32>
    %c0_4 = arith.constant 0 : index
    %c0_5 = arith.constant 0 : index
    %4 = vector.load %arg3[%c0_4, %c0_5] : memref<1x32xf32, #tpu.memory_space<vmem>>, vector<1x32xf32>
    %5 = vector.broadcast %4 : vector<1x32xf32> to vector<256x32xf32>
    %6 = arith.addf %3, %5 : vector<256x32xf32>
    %cst_6 = arith.constant 0.000000e+00 : f32
    %7 = vector.broadcast %cst_6 : f32 to vector<256x32xf32>
    %8 = arith.maximumf %6, %7 : vector<256x32xf32>
    %9 = tpu.iota {dimensions = array<i32: 0>} : vector<256x1xi32>
    %c16_i32 = arith.constant 16 : i32
    %c0_i32 = arith.constant 0 : i32
    %10 = arith.cmpi eq, %c16_i32, %c0_i32 : i32
    %c1_i32 = arith.constant 1 : i32
    %11 = arith.select %10, %c1_i32, %c16_i32 : i32
    %12 = vector.broadcast %11 : i32 to vector<256x1xi32>
    %13 = arith.remsi %9, %12 : vector<256x1xi32>
    %c0_i32_7 = arith.constant 0 : i32
    %14 = vector.broadcast %c0_i32_7 : i32 to vector<256x1xi32>
    %15 = arith.cmpi ne, %13, %14 : vector<256x1xi32>
    %c0_i32_8 = arith.constant 0 : i32
    %16 = vector.broadcast %c0_i32_8 : i32 to vector<256x1xi32>
    %17 = arith.cmpi slt, %13, %16 : vector<256x1xi32>
    %c0_i32_9 = arith.constant 0 : i32
    %18 = arith.cmpi slt, %11, %c0_i32_9 : i32
    %19 = vector.broadcast %18 : i1 to vector<256x1xi1>
    %20 = vector.broadcast %19 : vector<256x1xi1> to vector<256x1xi1>
    %21 = arith.xori %17, %20 : vector<256x1xi1>
    %22 = arith.andi %21, %15 : vector<256x1xi1>
    %23 = vector.broadcast %11 : i32 to vector<256x1xi32>
    %24 = arith.addi %13, %23 : vector<256x1xi32>
    %25 = arith.select %22, %24, %13 : vector<256x1xi1>, vector<256x1xi32>
    %cst_10 = arith.constant 0.000000e+00 : f32
    %26 = vector.broadcast %cst_10 : f32 to vector<256x32xf32>
    %c15_i32 = arith.constant 15 : i32
    %27 = vector.broadcast %c15_i32 : i32 to vector<256x1xi32>
    %28 = arith.cmpi slt, %25, %27 : vector<256x1xi32>
    %29 = vector.shape_cast %28 : vector<256x1xi1> to vector<256x1xi1>
    %30 = vector.broadcast %29 : vector<256x1xi1> to vector<256x32xi1>
    %31 = arith.select %30, %8, %26 : vector<256x32xi1>, vector<256x32xf32>
    %c1_i32_11 = arith.constant 1 : i32
    %32 = vector.broadcast %c1_i32_11 : i32 to vector<256x1xi32>
    %33 = arith.cmpi sge, %25, %32 : vector<256x1xi32>
    %34 = vector.shape_cast %33 : vector<256x1xi1> to vector<256x1xi1>
    %35 = vector.broadcast %34 : vector<256x1xi1> to vector<256x32xi1>
    %36 = arith.select %35, %8, %26 : vector<256x32xi1>, vector<256x32xf32>
    %cst_12 = arith.constant 0.000000e+00 : f32
    %37 = vector.broadcast %cst_12 : f32 to vector<24x32xf32>
    %38 = tpu.concatenate %37, %31, %37 in 0 : vector<24x32xf32>, vector<256x32xf32>, vector<24x32xf32> -> vector<304x32xf32>
    %39 = tpu.concatenate %37, %8, %37 in 0 : vector<24x32xf32>, vector<256x32xf32>, vector<24x32xf32> -> vector<304x32xf32>
    %40 = tpu.concatenate %37, %36, %37 in 0 : vector<24x32xf32>, vector<256x32xf32>, vector<24x32xf32> -> vector<304x32xf32>
    %41 = vector.extract_strided_slice %38 {offsets = [7, 0], sizes = [256, 32], strides = [1, 1]} : vector<304x32xf32> to vector<256x32xf32>
    %42 = vector.extract_strided_slice %39 {offsets = [8, 0], sizes = [256, 32], strides = [1, 1]} : vector<304x32xf32> to vector<256x32xf32>
    %43 = vector.extract_strided_slice %40 {offsets = [9, 0], sizes = [256, 32], strides = [1, 1]} : vector<304x32xf32> to vector<256x32xf32>
    %44 = vector.extract_strided_slice %38 {offsets = [23, 0], sizes = [256, 32], strides = [1, 1]} : vector<304x32xf32> to vector<256x32xf32>
    %45 = vector.extract_strided_slice %39 {offsets = [24, 0], sizes = [256, 32], strides = [1, 1]} : vector<304x32xf32> to vector<256x32xf32>
    %46 = vector.extract_strided_slice %40 {offsets = [25, 0], sizes = [256, 32], strides = [1, 1]} : vector<304x32xf32> to vector<256x32xf32>
    %47 = vector.extract_strided_slice %38 {offsets = [39, 0], sizes = [256, 32], strides = [1, 1]} : vector<304x32xf32> to vector<256x32xf32>
    %48 = vector.extract_strided_slice %39 {offsets = [40, 0], sizes = [256, 32], strides = [1, 1]} : vector<304x32xf32> to vector<256x32xf32>
    %49 = vector.extract_strided_slice %40 {offsets = [41, 0], sizes = [256, 32], strides = [1, 1]} : vector<304x32xf32> to vector<256x32xf32>
    %50 = tpu.concatenate %41, %42, %43, %44, %45, %46, %47, %48, %49 in 1 : vector<256x32xf32>, vector<256x32xf32>, vector<256x32xf32>, vector<256x32xf32>, vector<256x32xf32>, vector<256x32xf32>, vector<256x32xf32>, vector<256x32xf32>, vector<256x32xf32> -> vector<256x288xf32>
    %c0_13 = arith.constant 0 : index
    %c0_14 = arith.constant 0 : index
    %51 = vector.load %arg4[%c0_13, %c0_14] : memref<288x32xf32, #tpu.memory_space<vmem>>, vector<288x32xf32>
    %cst_15 = arith.constant dense<0.000000e+00> : vector<256x32xf32>
    %52 = tpu.matmul %50, %51, %cst_15 {dimension_numbers = #tpu.dot_dimension_numbers<[1], [0], [0], [1], [0, 0, 1, 1], [], []>} : vector<256x288xf32>, vector<288x32xf32>, vector<256x32xf32> -> vector<256x32xf32>
    %c0_16 = arith.constant 0 : index
    %c0_17 = arith.constant 0 : index
    %53 = vector.load %arg5[%c0_16, %c0_17] : memref<1x32xf32, #tpu.memory_space<vmem>>, vector<1x32xf32>
    %54 = vector.broadcast %53 : vector<1x32xf32> to vector<256x32xf32>
    %55 = arith.addf %52, %54 : vector<256x32xf32>
    %cst_18 = arith.constant 0.000000e+00 : f32
    %56 = vector.broadcast %cst_18 : f32 to vector<256x32xf32>
    %57 = arith.maximumf %55, %56 : vector<256x32xf32>
    %c0_19 = arith.constant 0 : index
    %c0_20 = arith.constant 0 : index
    %58 = vector.load %arg6[%c0_19, %c0_20] : memref<32x128xf32, #tpu.memory_space<vmem>>, vector<32x128xf32>
    %cst_21 = arith.constant dense<0.000000e+00> : vector<256x128xf32>
    %59 = tpu.matmul %57, %58, %cst_21 {dimension_numbers = #tpu.dot_dimension_numbers<[1], [0], [0], [1], [0, 0, 1, 1], [], []>} : vector<256x32xf32>, vector<32x128xf32>, vector<256x128xf32> -> vector<256x128xf32>
    %c0_22 = arith.constant 0 : index
    %c0_23 = arith.constant 0 : index
    %60 = vector.load %arg7[%c0_22, %c0_23] : memref<1x128xf32, #tpu.memory_space<vmem>>, vector<1x128xf32>
    %61 = vector.broadcast %60 : vector<1x128xf32> to vector<256x128xf32>
    %62 = arith.addf %59, %61 : vector<256x128xf32>
    %c0_24 = arith.constant 0 : index
    %c0_25 = arith.constant 0 : index
    %c0_26 = arith.constant 0 : index
    %63 = vector.load %arg1[%c0_24, %c0_25, %c0_26] : memref<1x256x128xf32, #tpu.memory_space<vmem>>, vector<1x256x128xf32>
    %64 = vector.shape_cast %63 : vector<1x256x128xf32> to vector<256x128xf32>
    %65 = arith.addf %62, %64 : vector<256x128xf32>
    %cst_27 = arith.constant 0.000000e+00 : f32
    %66 = vector.broadcast %cst_27 : f32 to vector<256x128xf32>
    %67 = arith.maximumf %65, %66 : vector<256x128xf32>
    %c0_28 = arith.constant 0 : index
    %c0_29 = arith.constant 0 : index
    %c0_30 = arith.constant 0 : index
    %68 = vector.load %arg8[%c0_28, %c0_29, %c0_30] : memref<1x256x128xf32, #tpu.memory_space<vmem>>, vector<1x256x128xf32>
    %69 = vector.shape_cast %68 : vector<1x256x128xf32> to vector<256x128xf32>
    %70 = vector.shape_cast %67 : vector<256x128xf32> to vector<1x256x128xf32>
    tpu.vector_store %arg8[%c0_28, %c0_29, %c0_30], %70 {strides = array<i32>} : memref<1x256x128xf32, #tpu.memory_space<vmem>>, vector<1x256x128xf32>,
    return
  }
  func.func @transform_0(%arg0: i32) -> (i32, i32, i32) {
    %c0_i32 = arith.constant 0 : i32
    %c0_i32_0 = arith.constant 0 : i32
    %c0_i32_1 = arith.constant 0 : i32
    return %arg0, %c0_i32, %c0_i32_0 : i32, i32, i32
  }
  func.func @transform_1(%arg0: i32) -> (i32, i32) {
    %c0_i32 = arith.constant 0 : i32
    %c0_i32_0 = arith.constant 0 : i32
    %c0_i32_1 = arith.constant 0 : i32
    return %c0_i32, %c0_i32_0 : i32, i32
  }
  func.func @transform_2(%arg0: i32) -> (i32, i32) {
    %c0_i32 = arith.constant 0 : i32
    %c0_i32_0 = arith.constant 0 : i32
    %c0_i32_1 = arith.constant 0 : i32
    return %c0_i32, %c0_i32_0 : i32, i32
  }
  func.func @transform_3(%arg0: i32) -> (i32, i32) {
    %c0_i32 = arith.constant 0 : i32
    %c0_i32_0 = arith.constant 0 : i32
    %c0_i32_1 = arith.constant 0 : i32
    return %c0_i32, %c0_i32_0 : i32, i32
  }
  func.func @transform_4(%arg0: i32) -> (i32, i32) {
    %c0_i32 = arith.constant 0 : i32
    %c0_i32_0 = arith.constant 0 : i32
    %c0_i32_1 = arith.constant 0 : i32
    return %c0_i32, %c0_i32_0 : i32, i32
  }
  func.func @transform_5(%arg0: i32) -> (i32, i32) {
    %c0_i32 = arith.constant 0 : i32
    %c0_i32_0 = arith.constant 0 : i32
    %c0_i32_1 = arith.constant 0 : i32
    return %c0_i32, %c0_i32_0 : i32, i32
  }
  func.func @transform_6(%arg0: i32) -> (i32, i32) {
    %c0_i32 = arith.constant 0 : i32
    %c0_i32_0 = arith.constant 0 : i32
    %c0_i32_1 = arith.constant 0 : i32
    return %c0_i32, %c0_i32_0 : i32, i32
  }
  func.func @transform_7(%arg0: i32) -> (i32, i32, i32) {
    %c0_i32 = arith.constant 0 : i32
    %c0_i32_0 = arith.constant 0 : i32
    %c0_i32_1 = arith.constant 0 : i32
    return %arg0, %c0_i32, %c0_i32_0 : i32, i32, i32
  }
}

</mosaic_0001>

<llo_original>
// kernel: tpu_custom_call.1
$region0: #{tpu_custom_call.1}
  #allocation0 [shape = 'u32[]', space=smem, size = 0x4, offset = 0x4, fixed_abs, tag = 'smem constant byte address 0x4 - core index']
  #allocation1 [shape = 'u32[72,128]{1,0:T(1,128)}', space=vmem, size = 0x9000, scoped, tag = 'internal scratch']
  %s0 = inlined_call_operand.vmem [shape: f32[2,256,128], index: 0, kind: input, shape index: {}]
  %s1 = inlined_call_operand.vmem [shape: f32[128,32], index: 1, kind: input, shape index: {}]
  %s2 = inlined_call_operand.hbm [shape: f32[1,32], index: 2, kind: input, shape index: {}]
  %s3 = inlined_call_operand.vmem [shape: f32[288,32], index: 3, kind: input, shape index: {}]
  %s4 = inlined_call_operand.hbm [shape: f32[1,32], index: 4, kind: input, shape index: {}]
  %s5 = inlined_call_operand.vmem [shape: f32[32,128], index: 5, kind: input, shape index: {}]
  %s6 = inlined_call_operand.vmem [shape: f32[1,128], index: 6, kind: input, shape index: {}]
  %s7 = inlined_call_operand.hbm [shape: f32[2,256,128], index: 7, kind: output, shape index: {}]
  %s8 = sld [smem:[#allocation0]]
  $region69: #{tpu_custom_call.1} parent=0
    _
  %s10 = ssub.s32 1, %s8
  %s11 = scalar_select 0, %s10, %s8
  $region1: #{tpu_custom_call.1} parent=0
    #allocation2 [shape = 'u8[512]{0}', space=vmem, size = 0x400, scoped, tag = 'input window, operand 2, single buffered']
    #allocation3 [shape = 's32[2]{0}', space=sflag, size = 0x8, scoped, tag = 'scoped memory for tpu_custom_call.1']
    #allocation4 [shape = 's32[2]{0}', space=sflag, size = 0x8, scoped, tag = 'scoped memory for tpu_custom_call.1']
    #allocation5 [shape = 'u8[512]{0}', space=vmem, size = 0x400, scoped, tag = 'input window, operand 4, single buffered']
    #allocation6 [shape = 's32[1]{0}', space=sflag, size = 0x4, scoped, tag = 'scoped memory for tpu_custom_call.1']
    #allocation7 [shape = 'u8[262144]{0}', space=vmem, size = 0x40000, scoped, tag = 'output window, operand 0']
    %12 = vsyncpa [#allocation3], 0
    %13 = vsyncpa [#allocation6], 0
    %14 = vsyncpa [#allocation4], 0
    %s15 = scalar_lea.sflag [#allocation4], 1
    %16 = vsyncpa %s15, 0
    loop: start=0, step=1, limit=4
    $region2: #{tpu_custom_call.1} parent=1 // loop_pre_header
      _
    $region3: #{tpu_custom_call.1} parent=1 // loop_header
      %s18 = sphi 0, %s22
      %p19 = scmp.ge.s32.totalorder %s18, 4
      %s28 = sphi 0, %s30
      %s31 = sphi 0, %s28
      %s32 = sphi 0, %s31
      %s48 = sphi 0, %s32
      %s52 = sphi 0, %s52
      %s54 = sphi 0, %s52
      %s55 = sphi 0, %s54
      %s69 = sphi 0, %s55
      %s73 = sphi 0, %s73
      %s75 = sphi 0, %s73
      %s76 = sphi 0, %s75
      %s90 = sphi 0, %s76
      %s94 = sphi 0, %s94
      %s96 = sphi 0, %s94
      %s97 = sphi 0, %s96
      %s111 = sphi 0, %s97
      %s115 = sphi 0, %s115
      %s117 = sphi 0, %s115
      %s118 = sphi 0, %s117
      %s132 = sphi 0, %s118
      %s136 = sphi 0, %s136
      %s138 = sphi 0, %s136
      %s139 = sphi 0, %s138
      %s153 = sphi 0, %s139
      %s157 = sphi 0, %s157
      %s159 = sphi 0, %s157
      %s160 = sphi 0, %s159
      %s174 = sphi 0, %s160
      %s180 = sphi 0, %s182
      %s183 = sphi 0, %s180
      %s184 = sphi 0, %s183
      %s200 = sphi 0, %s184
    $region4: #{tpu_custom_call.1} parent=1 // loop_header_branch
      %21 = sbr.rel (%p19) target = $region8
    $region5: #{tpu_custom_call.1} parent=1 // loop_body
      %s23 = ssub.s32 %s18, 1
      %s24 = ssub.s32 %s18, 2
      %s25 = sadd.s32 %s18, 1
      %s26 = ssub.s32 %s18, %s25
      %p27 = scmp.eq.s32.totalorder %s26, 0
      %s29 = sadd.s32 %s28, 1
      %s30 = scalar_select %p27, %s28, %s29
      %p33 = pneg %p27
      %p34 = scmp.eq.s32.totalorder %s18, 1
      %p35 = por %p33, %p34
      %p36 = scmp.ne.s32.totalorder %s28, %s31
      %p37 = scmp.eq.s32.totalorder %s18, 0
      %p38 = por %p36, %p37
      %p39 = scmp.ne.s32.totalorder %s28, %s31
      %p40 = scmp.eq.s32.totalorder %s23, 1
      %p41 = por %p39, %p40
      %p42 = scmp.ne.s32.totalorder %s31, %s32
      %p43 = scmp.eq.s32.totalorder %s23, 0
      %p44 = por %p42, %p43
      %p45 = scmp.ne.s32.totalorder %s31, %s32
      %p46 = scmp.eq.s32.totalorder %s24, 1
      %p47 = por %p45, %p46
      %p49 = scmp.ne.s32.totalorder %s32, %s48
      %p50 = scmp.eq.s32.totalorder %s24, 0
      %p51 = por %p49, %p50
      %s53 = sadd.s32 %s52, 1
      %p56 = scmp.eq.s32.totalorder %s18, 1
      %p57 = scmp.ne.s32.totalorder %s52, %s54
      %p58 = scmp.eq.s32.totalorder %s18, 0
      %p59 = por %p57, %p58
      %p60 = scmp.ne.s32.totalorder %s52, %s54
      %p61 = scmp.eq.s32.totalorder %s23, 1
      %p62 = por %p60, %p61
      %p63 = scmp.ne.s32.totalorder %s54, %s55
      %p64 = scmp.eq.s32.totalorder %s23, 0
      %p65 = por %p63, %p64
      %p66 = scmp.ne.s32.totalorder %s54, %s55
      %p67 = scmp.eq.s32.totalorder %s24, 1
      %p68 = por %p66, %p67
      %p70 = scmp.ne.s32.totalorder %s55, %s69
      %p71 = scmp.eq.s32.totalorder %s24, 0
      %p72 = por %p70, %p71
      %s74 = sadd.s32 %s73, 1
      %p77 = scmp.eq.s32.totalorder %s18, 1
      %p78 = scmp.ne.s32.totalorder %s73, %s75
      %p79 = scmp.eq.s32.totalorder %s18, 0
      %p80 = por %p78, %p79
      %p81 = scmp.ne.s32.totalorder %s73, %s75
      %p82 = scmp.eq.s32.totalorder %s23, 1
      %p83 = por %p81, %p82
      %p84 = scmp.ne.s32.totalorder %s75, %s76
      %p85 = scmp.eq.s32.totalorder %s23, 0
      %p86 = por %p84, %p85
      %p87 = scmp.ne.s32.totalorder %s75, %s76
      %p88 = scmp.eq.s32.totalorder %s24, 1
      %p89 = por %p87, %p88
      %p91 = scmp.ne.s32.totalorder %s76, %s90
      %p92 = scmp.eq.s32.totalorder %s24, 0
      %p93 = por %p91, %p92
      %s95 = sadd.s32 %s94, 1
      %p98 = scmp.eq.s32.totalorder %s18, 1
      %p99 = scmp.ne.s32.totalorder %s94, %s96
      %p100 = scmp.eq.s32.totalorder %s18, 0
      %p101 = por %p99, %p100
      %p102 = scmp.ne.s32.totalorder %s94, %s96
      %p103 = scmp.eq.s32.totalorder %s23, 1
      %p104 = por %p102, %p103
      %p105 = scmp.ne.s32.totalorder %s96, %s97
      %p106 = scmp.eq.s32.totalorder %s23, 0
      %p107 = por %p105, %p106
      %p108 = scmp.ne.s32.totalorder %s96, %s97
      %p109 = scmp.eq.s32.totalorder %s24, 1
      %p110 = por %p108, %p109
      %p112 = scmp.ne.s32.totalorder %s97, %s111
      %p113 = scmp.eq.s32.totalorder %s24, 0
      %p114 = por %p112, %p113
      %s116 = sadd.s32 %s115, 1
      %p119 = scmp.eq.s32.totalorder %s18, 1
      %p120 = scmp.ne.s32.totalorder %s115, %s117
      %p121 = scmp.eq.s32.totalorder %s18, 0
      %p122 = por %p120, %p121
      %p123 = scmp.ne.s32.totalorder %s115, %s117
      %p124 = scmp.eq.s32.totalorder %s23, 1
      %p125 = por %p123, %p124
      %p126 = scmp.ne.s32.totalorder %s117, %s118
      %p127 = scmp.eq.s32.totalorder %s23, 0
      %p128 = por %p126, %p127
      %p129 = scmp.ne.s32.totalorder %s117, %s118
      %p130 = scmp.eq.s32.totalorder %s24, 1
      %p131 = por %p129, %p130
      %p133 = scmp.ne.s32.totalorder %s118, %s132
      %p134 = scmp.eq.s32.totalorder %s24, 0
      %p135 = por %p133, %p134
      %s137 = sadd.s32 %s136, 1
      %p140 = scmp.eq.s32.totalorder %s18, 1
      %p141 = scmp.ne.s32.totalorder %s136, %s138
      %p142 = scmp.eq.s32.totalorder %s18, 0
      %p143 = por %p141, %p142
      %p144 = scmp.ne.s32.totalorder %s136, %s138
      %p145 = scmp.eq.s32.totalorder %s23, 1
      %p146 = por %p144, %p145
      %p147 = scmp.ne.s32.totalorder %s138, %s139
      %p148 = scmp.eq.s32.totalorder %s23, 0
      %p149 = por %p147, %p148
      %p150 = scmp.ne.s32.totalorder %s138, %s139
      %p151 = scmp.eq.s32.totalorder %s24, 1
      %p152 = por %p150, %p151
      %p154 = scmp.ne.s32.totalorder %s139, %s153
      %p155 = scmp.eq.s32.totalorder %s24, 0
      %p156 = por %p154, %p155
      %s158 = sadd.s32 %s157, 1
      %p161 = scmp.eq.s32.totalorder %s18, 1
      %p162 = scmp.ne.s32.totalorder %s157, %s159
      %p163 = scmp.eq.s32.totalorder %s18, 0
      %p164 = por %p162, %p163
      %p165 = scmp.ne.s32.totalorder %s157, %s159
      %p166 = scmp.eq.s32.totalorder %s23, 1
      %p167 = por %p165, %p166
      %p168 = scmp.ne.s32.totalorder %s159, %s160
      %p169 = scmp.eq.s32.totalorder %s23, 0
      %p170 = por %p168, %p169
      %p171 = scmp.ne.s32.totalorder %s159, %s160
      %p172 = scmp.eq.s32.totalorder %s24, 1
      %p173 = por %p171, %p172
      %p175 = scmp.ne.s32.totalorder %s160, %s174
      %p176 = scmp.eq.s32.totalorder %s24, 0
      %p177 = por %p175, %p176
      %s178 = ssub.s32 %s18, %s25
      %p179 = scmp.eq.s32.totalorder %s178, 0
      %s181 = sadd.s32 %s180, 1
      %s182 = scalar_select %p179, %s180, %s181
      %p185 = pneg %p179
      %p186 = scmp.eq.s32.totalorder %s18, 1
      %p187 = por %p185, %p186
      %p188 = scmp.ne.s32.totalorder %s180, %s183
      %p189 = scmp.eq.s32.totalorder %s18, 0
      %p190 = por %p188, %p189
      %p191 = scmp.ne.s32.totalorder %s180, %s183
      %p192 = scmp.eq.s32.totalorder %s23, 1
      %p193 = por %p191, %p192
      %p194 = scmp.ne.s32.totalorder %s183, %s184
      %p195 = scmp.eq.s32.totalorder %s23, 0
      %p196 = por %p194, %p195
      %p197 = scmp.ne.s32.totalorder %s183, %s184
      %p198 = scmp.eq.s32.totalorder %s24, 1
      %p199 = por %p197, %p198
      %p201 = scmp.ne.s32.totalorder %s184, %s200
      %p202 = scmp.eq.s32.totalorder %s24, 0
      %p203 = por %p201, %p202
      %p204 = scmp.le.s32.totalorder 1, %s18
      %p205 = scmp.lt.s32.totalorder %s18, 3
      %p206 = pnand %p204, %p205
      %p207 = pneg %p206
      // Predicated region
      $region9: #{tpu_custom_call.1} parent=5 // pred_check
        _
      $region10: #{tpu_custom_call.1} parent=5 // pred_check_branch
        %209 = sbr.rel (%p206) target = $region12
      $region11: #{tpu_custom_call.1} parent=5 // pred_region
        %s210 = ssub.s32 %s18, 1
        // Predicated region
        $region13: #{tpu_custom_call.1} parent=11 // pred_check
          %p211 = pneg %p65
        $region14: #{tpu_custom_call.1} parent=11 // pred_check_branch
          %213 = sbr.rel (%p211) target = $region16
        $region15: #{tpu_custom_call.1} parent=11 // pred_region
          _
        $region16: #{tpu_custom_call.1} parent=11 // pred_fallthru
          _
        // Predicated region
        $region17: #{tpu_custom_call.1} parent=11 // pred_check
          %p214 = pneg %p86
        $region18: #{tpu_custom_call.1} parent=11 // pred_check_branch
          %216 = sbr.rel (%p214) target = $region20
        $region19: #{tpu_custom_call.1} parent=11 // pred_region
          %218 = vsyncadd [#allocation3], 0
          %s220 = sshll.u32 %s2, 4
          %s221 = int_to_ptr.hbm [resolvable:$true] %s220
          %s222 = sshll.u32 [#allocation2], 4
          %s223 = int_to_ptr.vmem [resolvable:$true] %s222
          %225 = dma.hbm_to_vmem [thread:$0]  %s221, 16, %s223, [#allocation3]
        $region20: #{tpu_custom_call.1} parent=11 // pred_fallthru
          _
        // Predicated region
        $region21: #{tpu_custom_call.1} parent=11 // pred_check
          %p226 = pneg %p107
        $region22: #{tpu_custom_call.1} parent=11 // pred_check_branch
          %228 = sbr.rel (%p226) target = $region24
        $region23: #{tpu_custom_call.1} parent=11 // pred_region
          _
        $region24: #{tpu_custom_call.1} parent=11 // pred_fallthru
          _
        // Predicated region
        $region25: #{tpu_custom_call.1} parent=11 // pred_check
          %p229 = pneg %p128
        $region26: #{tpu_custom_call.1} parent=11 // pred_check_branch
          %231 = sbr.rel (%p229) target = $region28
        $region27: #{tpu_custom_call.1} parent=11 // pred_region
          %233 = vsyncadd [#allocation6], 0
          %s235 = sshll.u32 %s4, 4
          %s236 = int_to_ptr.hbm [resolvable:$true] %s235
          %s237 = sshll.u32 [#allocation5], 4
          %s238 = int_to_ptr.vmem [resolvable:$true] %s237
          %240 = dma.hbm_to_vmem [thread:$0]  %s236, 16, %s238, [#allocation6]
        $region28: #{tpu_custom_call.1} parent=11 // pred_fallthru
          _
        // Predicated region
        $region29: #{tpu_custom_call.1} parent=11 // pred_check
          %p241 = pneg %p149
        $region30: #{tpu_custom_call.1} parent=11 // pred_check_branch
          %243 = sbr.rel (%p241) target = $region32
        $region31: #{tpu_custom_call.1} parent=11 // pred_region
          _
        $region32: #{tpu_custom_call.1} parent=11 // pred_fallthru
          _
        // Predicated region
        $region33: #{tpu_custom_call.1} parent=11 // pred_check
          %p244 = pneg %p170
        $region34: #{tpu_custom_call.1} parent=11 // pred_check_branch
          %246 = sbr.rel (%p244) target = $region36
        $region35: #{tpu_custom_call.1} parent=11 // pred_region
          _
        $region36: #{tpu_custom_call.1} parent=11 // pred_fallthru
          _
      $region12: #{tpu_custom_call.1} parent=5 // pred_fallthru
        _
      %p247 = scmp.lt.s32.totalorder %s18, 2
      // Predicated region
      $region37: #{tpu_custom_call.1} parent=5 // pred_check
        %p248 = pneg %p247
      $region38: #{tpu_custom_call.1} parent=5 // pred_check_branch
        %250 = sbr.rel (%p248) target = $region40
      $region39: #{tpu_custom_call.1} parent=5 // pred_region
        // Predicated region
        $region41: #{tpu_custom_call.1} parent=39 // pred_check
          %p251 = pneg %p38
        $region42: #{tpu_custom_call.1} parent=39 // pred_check_branch
          %253 = sbr.rel (%p251) target = $region44
        $region43: #{tpu_custom_call.1} parent=39 // pred_region
          %p254 = scmp.lt.s32.totalorder %s18, 1
          %s255 = scalar_select %p254, %s18, 1
          %s256 = smul.addr %s255, 32
          %s257 = smul.addr %s256, 8
          %s258 = scalar_lea.vmem %s0, %s257
        $region44: #{tpu_custom_call.1} parent=39 // pred_fallthru
          _
      $region40: #{tpu_custom_call.1} parent=5 // pred_fallthru
        _
      %p259 = scmp.le.s32.totalorder 1, %s18
      %p260 = scmp.lt.s32.totalorder %s18, 3
      %p261 = pnand %p259, %p260
      %p262 = pneg %p261
      // Predicated region
      $region45: #{tpu_custom_call.1} parent=5 // pred_check
        _
      $region46: #{tpu_custom_call.1} parent=5 // pred_check_branch
        %264 = sbr.rel (%p261) target = $region48
      $region47: #{tpu_custom_call.1} parent=5 // pred_region
        %s265 = ssub.s32 %s18, 1
        // Predicated region
        $region49: #{tpu_custom_call.1} parent=47 // pred_check
          %p266 = pneg %p86
        $region50: #{tpu_custom_call.1} parent=47 // pred_check_branch
          %268 = sbr.rel (%p266) target = $region52
        $region51: #{tpu_custom_call.1} parent=47 // pred_region
          %270 = dma.done [#allocation3], 16
        $region52: #{tpu_custom_call.1} parent=47 // pred_fallthru
          _
        // Predicated region
        $region53: #{tpu_custom_call.1} parent=47 // pred_check
          %p271 = pneg %p128
        $region54: #{tpu_custom_call.1} parent=47 // pred_check_branch
          %273 = sbr.rel (%p271) target = $region56
        $region55: #{tpu_custom_call.1} parent=47 // pred_region
          %275 = dma.done [#allocation6], 16
        $region56: #{tpu_custom_call.1} parent=47 // pred_fallthru
          _
        %p276 = scmp.lt.s32.totalorder %s23, 1
        %s277 = scalar_select %p276, %s23, 1
        %s278 = smul.addr %s277, 32
        %s279 = smul.addr %s278, 8
        %s280 = scalar_lea.vmem %s0, %s279
        %p281 = pneg %p44
        %p282 = pneg %p41
        %p283 = pneg %p65
        %p284 = pneg %p62
        %p285 = pneg %p86
        %p286 = pneg %p83
        %p287 = pneg %p107
        %p288 = pneg %p104
        %p289 = pneg %p128
        %p290 = pneg %p125
        %p291 = pneg %p149
        %p292 = pneg %p146
        %p293 = pneg %p170
        %p294 = pneg %p167
        %p295 = pneg %p196
        %p296 = pneg %p193
        %s297 = sand.u32 %s183, 1
        %s298 = scalar_lea.sflag [#allocation4], %s297
        %s299 = sand.u32 %s183, 1
        %s300 = smul.addr %s299, 256
        %s301 = scalar_lea.vmem [#allocation7], %s300
        %p302 = scmp.lt.s32.totalorder %s23, 1
        %s303 = scalar_select %p302, %s23, 1
        %s304 = smul.addr %s303, 32
        %s305 = smul.addr %s304, 8
        %s306 = scalar_lea.vmem %s0, %s305
        %v307 = vld [vmem:[%s306] sm:$0xff]
        %v308 = vld [vmem:[%s306 + $0x8] sm:$0xff]
        %v309 = vld [vmem:[%s306 + $0x10] sm:$0xff]
        %v310 = vld [vmem:[%s306 + $0x18] sm:$0xff]
        %v311 = vld [vmem:[%s306 + $0x20] sm:$0xff]
        %v312 = vld [vmem:[%s306 + $0x28] sm:$0xff]
        %v313 = vld [vmem:[%s306 + $0x30] sm:$0xff]
        %v314 = vld [vmem:[%s306 + $0x38] sm:$0xff]
        %v315 = vld [vmem:[%s306 + $0x40] sm:$0xff]
        %v316 = vld [vmem:[%s306 + $0x48] sm:$0xff]
        %v317 = vld [vmem:[%s306 + $0x50] sm:$0xff]
        %v318 = vld [vmem:[%s306 + $0x58] sm:$0xff]
        %v319 = vld [vmem:[%s306 + $0x60] sm:$0xff]
        %v320 = vld [vmem:[%s306 + $0x68] sm:$0xff]
        %v321 = vld [vmem:[%s306 + $0x70] sm:$0xff]
        %v322 = vld [vmem:[%s306 + $0x78] sm:$0xff]
        %v323 = vld [vmem:[%s306 + $0x80] sm:$0xff]
        %v324 = vld [vmem:[%s306 + $0x88] sm:$0xff]
        %v325 = vld [vmem:[%s306 + $0x90] sm:$0xff]
        %v326 = vld [vmem:[%s306 + $0x98] sm:$0xff]
        %v327 = vld [vmem:[%s306 + $0xa0] sm:$0xff]
        %v328 = vld [vmem:[%s306 + $0xa8] sm:$0xff]
        %v329 = vld [vmem:[%s306 + $0xb0] sm:$0xff]
        %v330 = vld [vmem:[%s306 + $0xb8] sm:$0xff]
        %v331 = vld [vmem:[%s306 + $0xc0] sm:$0xff]
        %v332 = vld [vmem:[%s306 + $0xc8] sm:$0xff]
        %v333 = vld [vmem:[%s306 + $0xd0] sm:$0xff]
        %v334 = vld [vmem:[%s306 + $0xd8] sm:$0xff]
        %v335 = vld [vmem:[%s306 + $0xe0] sm:$0xff]
        %v336 = vld [vmem:[%s306 + $0xe8] sm:$0xff]
        %v337 = vld [vmem:[%s306 + $0xf0] sm:$0xff]
        %v338 = vld [vmem:[%s306 + $0xf8] sm:$0xff]
        %v339 = vld [vmem:[%s1] sm:$0xff]
        %v340 = vld [vmem:[%s1 + $0x8] sm:$0xff]
        %v341 = vld [vmem:[%s1 + $0x10] sm:$0xff]
        %v342 = vld [vmem:[%s1 + $0x18] sm:$0xff]
        %v343 = vld [vmem:[%s1 + $0x20] sm:$0xff]
        %v344 = vld [vmem:[%s1 + $0x28] sm:$0xff]
        %v345 = vld [vmem:[%s1 + $0x30] sm:$0xff]
        %v346 = vld [vmem:[%s1 + $0x38] sm:$0xff]
        %v347 = vld [vmem:[%s1 + $0x40] sm:$0xff]
        %v348 = vld [vmem:[%s1 + $0x48] sm:$0xff]
        %v349 = vld [vmem:[%s1 + $0x50] sm:$0xff]
        %v350 = vld [vmem:[%s1 + $0x58] sm:$0xff]
        %v351 = vld [vmem:[%s1 + $0x60] sm:$0xff]
        %v352 = vld [vmem:[%s1 + $0x68] sm:$0xff]
        %v353 = vld [vmem:[%s1 + $0x70] sm:$0xff]
        %v354 = vld [vmem:[%s1 + $0x78] sm:$0xff]
        %v355 = vld [vmem:[#allocation2] sm:$0x1]
        %v357 = vperm.slane %v355, 0
        %359 = vmatpush.msra.mxu0 %v354
        %360 = vmatpush.msra.mxu0 %v353
        %361 = vmatpush.msra.mxu0 %v352
        %362 = vmatpush.msra.mxu0 %v351
        %363 = vmatpush.msra.mxu0 %v350
        %364 = vmatpush.msra.mxu0 %v349
        %365 = vmatpush.msra.mxu0 %v348
        %366 = vmatpush.msra.mxu0 %v347
        %367 = vmatpush.msra.mxu0 %v346
        %368 = vmatpush.msra.mxu0 %v345
        %369 = vmatpush.msra.mxu0 %v344
        %370 = vmatpush.msra.mxu0 %v343
        %371 = vmatpush.msra.mxu0 %v342
        %372 = vmatpush.msra.mxu0 %v341
        %373 = vmatpush.msra.mxu0 %v340
        %374 = vmatpush.msra.mxu0 %v339
        %375 = vmatmul.f32.gmra.mxu0 %v307
        %v376 = vpop.f32.mrf.mxu0
        %v377 = vadd.f32 %v357, %v376
        %378 = vmatmul.f32.gmra.mxu0 %v308
        %v379 = vpop.f32.mrf.mxu0
        %v380 = vadd.f32 %v357, %v379
        %381 = vmatmul.f32.gmra.mxu0 %v309
        %v382 = vpop.f32.mrf.mxu0
        %v383 = vadd.f32 %v357, %v382
        %384 = vmatmul.f32.gmra.mxu0 %v310
        %v385 = vpop.f32.mrf.mxu0
        %v386 = vadd.f32 %v357, %v385
        %387 = vmatmul.f32.gmra.mxu0 %v311
        %v388 = vpop.f32.mrf.mxu0
        %v389 = vadd.f32 %v357, %v388
        %390 = vmatmul.f32.gmra.mxu0 %v312
        %v391 = vpop.f32.mrf.mxu0
        %v392 = vadd.f32 %v357, %v391
        %393 = vmatmul.f32.gmra.mxu0 %v313
        %v394 = vpop.f32.mrf.mxu0
        %v395 = vadd.f32 %v357, %v394
        %396 = vmatmul.f32.gmra.mxu0 %v314
        %v397 = vpop.f32.mrf.mxu0
        %v398 = vadd.f32 %v357, %v397
        %399 = vmatmul.f32.gmra.mxu0 %v315
        %v400 = vpop.f32.mrf.mxu0
        %v401 = vadd.f32 %v357, %v400
        %402 = vmatmul.f32.gmra.mxu0 %v316
        %v403 = vpop.f32.mrf.mxu0
        %v404 = vadd.f32 %v357, %v403
        %405 = vmatmul.f32.gmra.mxu0 %v317
        %v406 = vpop.f32.mrf.mxu0
        %v407 = vadd.f32 %v357, %v406
        %408 = vmatmul.f32.gmra.mxu0 %v318
        %v409 = vpop.f32.mrf.mxu0
        %v410 = vadd.f32 %v357, %v409
        %411 = vmatmul.f32.gmra.mxu0 %v319
        %v412 = vpop.f32.mrf.mxu0
        %v413 = vadd.f32 %v357, %v412
        %414 = vmatmul.f32.gmra.mxu0 %v320
        %v415 = vpop.f32.mrf.mxu0
        %v416 = vadd.f32 %v357, %v415
        %417 = vmatmul.f32.gmra.mxu0 %v321
        %v418 = vpop.f32.mrf.mxu0
        %v419 = vadd.f32 %v357, %v418
        %420 = vmatmul.f32.gmra.mxu0 %v322
        %v421 = vpop.f32.mrf.mxu0
        %v422 = vadd.f32 %v357, %v421
        %423 = vmatmul.f32.gmra.mxu0 %v323
        %v424 = vpop.f32.mrf.mxu0
        %v425 = vadd.f32 %v357, %v424
        %426 = vmatmul.f32.gmra.mxu0 %v324
        %v427 = vpop.f32.mrf.mxu0
        %v428 = vadd.f32 %v357, %v427
        %429 = vmatmul.f32.gmra.mxu0 %v325
        %v430 = vpop.f32.mrf.mxu0
        %v431 = vadd.f32 %v357, %v430
        %432 = vmatmul.f32.gmra.mxu0 %v326
        %v433 = vpop.f32.mrf.mxu0
        %v434 = vadd.f32 %v357, %v433
        %435 = vmatmul.f32.gmra.mxu0 %v327
        %v436 = vpop.f32.mrf.mxu0
        %v437 = vadd.f32 %v357, %v436
        %438 = vmatmul.f32.gmra.mxu0 %v328
        %v439 = vpop.f32.mrf.mxu0
        %v440 = vadd.f32 %v357, %v439
        %441 = vmatmul.f32.gmra.mxu0 %v329
        %v442 = vpop.f32.mrf.mxu0
        %v443 = vadd.f32 %v357, %v442
        %444 = vmatmul.f32.gmra.mxu0 %v330
        %v445 = vpop.f32.mrf.mxu0
        %v446 = vadd.f32 %v357, %v445
        %447 = vmatmul.f32.gmra.mxu0 %v331
        %v448 = vpop.f32.mrf.mxu0
        %v449 = vadd.f32 %v357, %v448
        %450 = vmatmul.f32.gmra.mxu0 %v332
        %v451 = vpop.f32.mrf.mxu0
        %v452 = vadd.f32 %v357, %v451
        %453 = vmatmul.f32.gmra.mxu0 %v333
        %v454 = vpop.f32.mrf.mxu0
        %v455 = vadd.f32 %v357, %v454
        %456 = vmatmul.f32.gmra.mxu0 %v334
        %v457 = vpop.f32.mrf.mxu0
        %v458 = vadd.f32 %v357, %v457
        %459 = vmatmul.f32.gmra.mxu0 %v335
        %v460 = vpop.f32.mrf.mxu0
        %v461 = vadd.f32 %v357, %v460
        %462 = vmatmul.f32.gmra.mxu0 %v336
        %v463 = vpop.f32.mrf.mxu0
        %v464 = vadd.f32 %v357, %v463
        %465 = vmatmul.f32.gmra.mxu0 %v337
        %v466 = vpop.f32.mrf.mxu0
        %v467 = vadd.f32 %v357, %v466
        %468 = vmatmul.f32.gmra.mxu0 %v338
        %v469 = vpop.f32.mrf.mxu0
        %v470 = vadd.f32 %v357, %v469
        %471 = vdwg.mxu0
        %v472 = vmax.f32 %v377, 0.0
        %v473 = vmax.f32 %v380, 0.0
        %v474 = vmax.f32 %v383, 0.0
        %v475 = vmax.f32 %v386, 0.0
        %v476 = vmax.f32 %v389, 0.0
        %v477 = vmax.f32 %v392, 0.0
        %v478 = vmax.f32 %v395, 0.0
        %v479 = vmax.f32 %v398, 0.0
        %v480 = vmax.f32 %v401, 0.0
        %v481 = vmax.f32 %v404, 0.0
        %v482 = vmax.f32 %v407, 0.0
        %v483 = vmax.f32 %v410, 0.0
        %v484 = vmax.f32 %v413, 0.0
        %v485 = vmax.f32 %v416, 0.0
        %v486 = vmax.f32 %v419, 0.0
        %v487 = vmax.f32 %v422, 0.0
        %v488 = vmax.f32 %v425, 0.0
        %v489 = vmax.f32 %v428, 0.0
        %v490 = vmax.f32 %v431, 0.0
        %v491 = vmax.f32 %v434, 0.0
        %v492 = vmax.f32 %v437, 0.0
        %v493 = vmax.f32 %v440, 0.0
        %v494 = vmax.f32 %v443, 0.0
        %v495 = vmax.f32 %v446, 0.0
        %v496 = vmax.f32 %v449, 0.0
        %v497 = vmax.f32 %v452, 0.0
        %v498 = vmax.f32 %v455, 0.0
        %v499 = vmax.f32 %v458, 0.0
        %v500 = vmax.f32 %v461, 0.0
        %v501 = vmax.f32 %v464, 0.0
        %v502 = vmax.f32 %v467, 0.0
        %v503 = vmax.f32 %v470, 0.0
        %v504 = vlaneseq
        %v505 = vshrl.u32 %v504, 7
        %v506 = vadd.s32 %v505, 8
        %v507 = vadd.s32 %v505, 16
        %v508 = vadd.s32 %v505, 24
        %v509 = vadd.s32 %v505, 32
        %v510 = vadd.s32 %v505, 40
        %v511 = vadd.s32 %v505, 48
        %v512 = vadd.s32 %v505, 56
        %v513 = vadd.s32 %v505, 64
        %v514 = vadd.s32 %v505, 72
        %v515 = vadd.s32 %v505, 80
        %v516 = vadd.s32 %v505, 88
        %v517 = vadd.s32 %v505, 96
        %v518 = vadd.s32 %v505, 104
        %v519 = vadd.s32 %v505, 112
        %v520 = vadd.s32 %v505, 120
        %v521 = vadd.s32 %v505, 128
        %v522 = vadd.s32 %v505, 136
        %v523 = vadd.s32 %v505, 144
        %v524 = vadd.s32 %v505, 152
        %v525 = vadd.s32 %v505, 160
        %v526 = vadd.s32 %v505, 168
        %v527 = vadd.s32 %v505, 176
        %v528 = vadd.s32 %v505, 184
        %v529 = vadd.s32 %v505, 192
        %v530 = vadd.s32 %v505, 200
        %v531 = vadd.s32 %v505, 208
        %v532 = vadd.s32 %v505, 216
        %v533 = vadd.s32 %v505, 224
        %v534 = vadd.s32 %v505, 232
        %v535 = vadd.s32 %v505, 240
        %v536 = vadd.s32 %v505, 248
        %vm537 = vcmp.lt.s32.totalorder %v505, 0
        %v538 = vsub.s32 0, %v505
        %v539 = vsel %vm537, %v538, %v505
        %v540 = vshrl.u32 %v539, 4
        %v541 = vand.u32 %v539, 15
        %v542 = vsub.s32 0, %v541
        %v543 = vsel %vm537, %v542, %v541
        %vm544 = vcmp.lt.s32.totalorder %v506, 0
        %v545 = vsub.s32 0, %v506
        %v546 = vsel %vm544, %v545, %v506
        %v547 = vshrl.u32 %v546, 4
        %v548 = vand.u32 %v546, 15
        %v549 = vsub.s32 0, %v548
        %v550 = vsel %vm544, %v549, %v548
        %vm551 = vcmp.lt.s32.totalorder %v507, 0
        %v552 = vsub.s32 0, %v507
        %v553 = vsel %vm551, %v552, %v507
        %v554 = vshrl.u32 %v553, 4
        %v555 = vand.u32 %v553, 15
        %v556 = vsub.s32 0, %v555
        %v557 = vsel %vm551, %v556, %v555
        %vm558 = vcmp.lt.s32.totalorder %v508, 0
        %v559 = vsub.s32 0, %v508
        %v560 = vsel %vm558, %v559, %v508
        %v561 = vshrl.u32 %v560, 4
        %v562 = vand.u32 %v560, 15
        %v563 = vsub.s32 0, %v562
        %v564 = vsel %vm558, %v563, %v562
        %vm565 = vcmp.lt.s32.totalorder %v509, 0
        %v566 = vsub.s32 0, %v509
        %v567 = vsel %vm565, %v566, %v509
        %v568 = vshrl.u32 %v567, 4
        %v569 = vand.u32 %v567, 15
        %v570 = vsub.s32 0, %v569
        %v571 = vsel %vm565, %v570, %v569
        %vm572 = vcmp.lt.s32.totalorder %v510, 0
        %v573 = vsub.s32 0, %v510
        %v574 = vsel %vm572, %v573, %v510
        %v575 = vshrl.u32 %v574, 4
        %v576 = vand.u32 %v574, 15
        %v577 = vsub.s32 0, %v576
        %v578 = vsel %vm572, %v577, %v576
        %vm579 = vcmp.lt.s32.totalorder %v511, 0
        %v580 = vsub.s32 0, %v511
        %v581 = vsel %vm579, %v580, %v511
        %v582 = vshrl.u32 %v581, 4
        %v583 = vand.u32 %v581, 15
        %v584 = vsub.s32 0, %v583
        %v585 = vsel %vm579, %v584, %v583
        %vm586 = vcmp.lt.s32.totalorder %v512, 0
        %v587 = vsub.s32 0, %v512
        %v588 = vsel %vm586, %v587, %v512
        %v589 = vshrl.u32 %v588, 4
        %v590 = vand.u32 %v588, 15
        %v591 = vsub.s32 0, %v590
        %v592 = vsel %vm586, %v591, %v590
        %vm593 = vcmp.lt.s32.totalorder %v513, 0
        %v594 = vsub.s32 0, %v513
        %v595 = vsel %vm593, %v594, %v513
        %v596 = vshrl.u32 %v595, 4
        %v597 = vand.u32 %v595, 15
        %v598 = vsub.s32 0, %v597
        %v599 = vsel %vm593, %v598, %v597
        %vm600 = vcmp.lt.s32.totalorder %v514, 0
        %v601 = vsub.s32 0, %v514
        %v602 = vsel %vm600, %v601, %v514
        %v603 = vshrl.u32 %v602, 4
        %v604 = vand.u32 %v602, 15
        %v605 = vsub.s32 0, %v604
        %v606 = vsel %vm600, %v605, %v604
        %vm607 = vcmp.lt.s32.totalorder %v515, 0
        %v608 = vsub.s32 0, %v515
        %v609 = vsel %vm607, %v608, %v515
        %v610 = vshrl.u32 %v609, 4
        %v611 = vand.u32 %v609, 15
        %v612 = vsub.s32 0, %v611
        %v613 = vsel %vm607, %v612, %v611
        %vm614 = vcmp.lt.s32.totalorder %v516, 0
        %v615 = vsub.s32 0, %v516
        %v616 = vsel %vm614, %v615, %v516
        %v617 = vshrl.u32 %v616, 4
        %v618 = vand.u32 %v616, 15
        %v619 = vsub.s32 0, %v618
        %v620 = vsel %vm614, %v619, %v618
        %vm621 = vcmp.lt.s32.totalorder %v517, 0
        %v622 = vsub.s32 0, %v517
        %v623 = vsel %vm621, %v622, %v517
        %v624 = vshrl.u32 %v623, 4
        %v625 = vand.u32 %v623, 15
        %v626 = vsub.s32 0, %v625
        %v627 = vsel %vm621, %v626, %v625
        %vm628 = vcmp.lt.s32.totalorder %v518, 0
        %v629 = vsub.s32 0, %v518
        %v630 = vsel %vm628, %v629, %v518
        %v631 = vshrl.u32 %v630, 4
        %v632 = vand.u32 %v630, 15
        %v633 = vsub.s32 0, %v632
        %v634 = vsel %vm628, %v633, %v632
        %vm635 = vcmp.lt.s32.totalorder %v519, 0
        %v636 = vsub.s32 0, %v519
        %v637 = vsel %vm635, %v636, %v519
        %v638 = vshrl.u32 %v637, 4
        %v639 = vand.u32 %v637, 15
        %v640 = vsub.s32 0, %v639
        %v641 = vsel %vm635, %v640, %v639
        %vm642 = vcmp.lt.s32.totalorder %v520, 0
        %v643 = vsub.s32 0, %v520
        %v644 = vsel %vm642, %v643, %v520
        %v645 = vshrl.u32 %v644, 4
        %v646 = vand.u32 %v644, 15
        %v647 = vsub.s32 0, %v646
        %v648 = vsel %vm642, %v647, %v646
        %vm649 = vcmp.lt.s32.totalorder %v521, 0
        %v650 = vsub.s32 0, %v521
        %v651 = vsel %vm649, %v650, %v521
        %v652 = vshrl.u32 %v651, 4
        %v653 = vand.u32 %v651, 15
        %v654 = vsub.s32 0, %v653
        %v655 = vsel %vm649, %v654, %v653
        %vm656 = vcmp.lt.s32.totalorder %v522, 0
        %v657 = vsub.s32 0, %v522
        %v658 = vsel %vm656, %v657, %v522
        %v659 = vshrl.u32 %v658, 4
        %v660 = vand.u32 %v658, 15
        %v661 = vsub.s32 0, %v660
        %v662 = vsel %vm656, %v661, %v660
        %vm663 = vcmp.lt.s32.totalorder %v523, 0
        %v664 = vsub.s32 0, %v523
        %v665 = vsel %vm663, %v664, %v523
        %v666 = vshrl.u32 %v665, 4
        %v667 = vand.u32 %v665, 15
        %v668 = vsub.s32 0, %v667
        %v669 = vsel %vm663, %v668, %v667
        %vm670 = vcmp.lt.s32.totalorder %v524, 0
        %v671 = vsub.s32 0, %v524
        %v672 = vsel %vm670, %v671, %v524
        %v673 = vshrl.u32 %v672, 4
        %v674 = vand.u32 %v672, 15
        %v675 = vsub.s32 0, %v674
        %v676 = vsel %vm670, %v675, %v674
        %vm677 = vcmp.lt.s32.totalorder %v525, 0
        %v678 = vsub.s32 0, %v525
        %v679 = vsel %vm677, %v678, %v525
        %v680 = vshrl.u32 %v679, 4
        %v681 = vand.u32 %v679, 15
        %v682 = vsub.s32 0, %v681
        %v683 = vsel %vm677, %v682, %v681
        %vm684 = vcmp.lt.s32.totalorder %v526, 0
        %v685 = vsub.s32 0, %v526
        %v686 = vsel %vm684, %v685, %v526
        %v687 = vshrl.u32 %v686, 4
        %v688 = vand.u32 %v686, 15
        %v689 = vsub.s32 0, %v688
        %v690 = vsel %vm684, %v689, %v688
        %vm691 = vcmp.lt.s32.totalorder %v527, 0
        %v692 = vsub.s32 0, %v527
        %v693 = vsel %vm691, %v692, %v527
        %v694 = vshrl.u32 %v693, 4
        %v695 = vand.u32 %v693, 15
        %v696 = vsub.s32 0, %v695
        %v697 = vsel %vm691, %v696, %v695
        %vm698 = vcmp.lt.s32.totalorder %v528, 0
        %v699 = vsub.s32 0, %v528
        %v700 = vsel %vm698, %v699, %v528
        %v701 = vshrl.u32 %v700, 4
        %v702 = vand.u32 %v700, 15
        %v703 = vsub.s32 0, %v702
        %v704 = vsel %vm698, %v703, %v702
        %vm705 = vcmp.lt.s32.totalorder %v529, 0
        %v706 = vsub.s32 0, %v529
        %v707 = vsel %vm705, %v706, %v529
        %v708 = vshrl.u32 %v707, 4
        %v709 = vand.u32 %v707, 15
        %v710 = vsub.s32 0, %v709
        %v711 = vsel %vm705, %v710, %v709
        %vm712 = vcmp.lt.s32.totalorder %v530, 0
        %v713 = vsub.s32 0, %v530
        %v714 = vsel %vm712, %v713, %v530
        %v715 = vshrl.u32 %v714, 4
        %v716 = vand.u32 %v714, 15
        %v717 = vsub.s32 0, %v716
        %v718 = vsel %vm712, %v717, %v716
        %vm719 = vcmp.lt.s32.totalorder %v531, 0
        %v720 = vsub.s32 0, %v531
        %v721 = vsel %vm719, %v720, %v531
        %v722 = vshrl.u32 %v721, 4
        %v723 = vand.u32 %v721, 15
        %v724 = vsub.s32 0, %v723
        %v725 = vsel %vm719, %v724, %v723
        %vm726 = vcmp.lt.s32.totalorder %v532, 0
        %v727 = vsub.s32 0, %v532
        %v728 = vsel %vm726, %v727, %v532
        %v729 = vshrl.u32 %v728, 4
        %v730 = vand.u32 %v728, 15
        %v731 = vsub.s32 0, %v730
        %v732 = vsel %vm726, %v731, %v730
        %vm733 = vcmp.lt.s32.totalorder %v533, 0
        %v734 = vsub.s32 0, %v533
        %v735 = vsel %vm733, %v734, %v533
        %v736 = vshrl.u32 %v735, 4
        %v737 = vand.u32 %v735, 15
        %v738 = vsub.s32 0, %v737
        %v739 = vsel %vm733, %v738, %v737
        %vm740 = vcmp.lt.s32.totalorder %v534, 0
        %v741 = vsub.s32 0, %v534
        %v742 = vsel %vm740, %v741, %v534
        %v743 = vshrl.u32 %v742, 4
        %v744 = vand.u32 %v742, 15
        %v745 = vsub.s32 0, %v744
        %v746 = vsel %vm740, %v745, %v744
        %vm747 = vcmp.lt.s32.totalorder %v535, 0
        %v748 = vsub.s32 0, %v535
        %v749 = vsel %vm747, %v748, %v535
        %v750 = vshrl.u32 %v749, 4
        %v751 = vand.u32 %v749, 15
        %v752 = vsub.s32 0, %v751
        %v753 = vsel %vm747, %v752, %v751
        %vm754 = vcmp.lt.s32.totalorder %v536, 0
        %v755 = vsub.s32 0, %v536
        %v756 = vsel %vm754, %v755, %v536
        %v757 = vshrl.u32 %v756, 4
        %v758 = vand.u32 %v756, 15
        %v759 = vsub.s32 0, %v758
        %v760 = vsel %vm754, %v759, %v758
        %vm761 = vcmp.ne.s32.totalorder %v543, 0
        %vm762 = vcmp.ne.s32.totalorder %v550, 0
        %vm763 = vcmp.ne.s32.totalorder %v557, 0
        %vm764 = vcmp.ne.s32.totalorder %v564, 0
        %vm765 = vcmp.ne.s32.totalorder %v571, 0
        %vm766 = vcmp.ne.s32.totalorder %v578, 0
        %vm767 = vcmp.ne.s32.totalorder %v585, 0
        %vm768 = vcmp.ne.s32.totalorder %v592, 0
        %vm769 = vcmp.ne.s32.totalorder %v599, 0
        %vm770 = vcmp.ne.s32.totalorder %v606, 0
        %vm771 = vcmp.ne.s32.totalorder %v613, 0
        %vm772 = vcmp.ne.s32.totalorder %v620, 0
        %vm773 = vcmp.ne.s32.totalorder %v627, 0
        %vm774 = vcmp.ne.s32.totalorder %v634, 0
        %vm775 = vcmp.ne.s32.totalorder %v641, 0
        %vm776 = vcmp.ne.s32.totalorder %v648, 0
        %vm777 = vcmp.ne.s32.totalorder %v655, 0
        %vm778 = vcmp.ne.s32.totalorder %v662, 0
        %vm779 = vcmp.ne.s32.totalorder %v669, 0
        %vm780 = vcmp.ne.s32.totalorder %v676, 0
        %vm781 = vcmp.ne.s32.totalorder %v683, 0
        %vm782 = vcmp.ne.s32.totalorder %v690, 0
        %vm783 = vcmp.ne.s32.totalorder %v697, 0
        %vm784 = vcmp.ne.s32.totalorder %v704, 0
        %vm785 = vcmp.ne.s32.totalorder %v711, 0
        %vm786 = vcmp.ne.s32.totalorder %v718, 0
        %vm787 = vcmp.ne.s32.totalorder %v725, 0
        %vm788 = vcmp.ne.s32.totalorder %v732, 0
        %vm789 = vcmp.ne.s32.totalorder %v739, 0
        %vm790 = vcmp.ne.s32.totalorder %v746, 0
        %vm791 = vcmp.ne.s32.totalorder %v753, 0
        %vm792 = vcmp.ne.s32.totalorder %v760, 0
        %vm793 = vcmp.lt.s32.totalorder %v543, 0
        %vm794 = vcmp.lt.s32.totalorder %v550, 0
        %vm795 = vcmp.lt.s32.totalorder %v557, 0
        %vm796 = vcmp.lt.s32.totalorder %v564, 0
        %vm797 = vcmp.lt.s32.totalorder %v571, 0
        %vm798 = vcmp.lt.s32.totalorder %v578, 0
        %vm799 = vcmp.lt.s32.totalorder %v585, 0
        %vm800 = vcmp.lt.s32.totalorder %v592, 0
        %vm801 = vcmp.lt.s32.totalorder %v599, 0
        %vm802 = vcmp.lt.s32.totalorder %v606, 0
        %vm803 = vcmp.lt.s32.totalorder %v613, 0
        %vm804 = vcmp.lt.s32.totalorder %v620, 0
        %vm805 = vcmp.lt.s32.totalorder %v627, 0
        %vm806 = vcmp.lt.s32.totalorder %v634, 0
        %vm807 = vcmp.lt.s32.totalorder %v641, 0
        %vm808 = vcmp.lt.s32.totalorder %v648, 0
        %vm809 = vcmp.lt.s32.totalorder %v655, 0
        %vm810 = vcmp.lt.s32.totalorder %v662, 0
        %vm811 = vcmp.lt.s32.totalorder %v669, 0
        %vm812 = vcmp.lt.s32.totalorder %v676, 0
        %vm813 = vcmp.lt.s32.totalorder %v683, 0
        %vm814 = vcmp.lt.s32.totalorder %v690, 0
        %vm815 = vcmp.lt.s32.totalorder %v697, 0
        %vm816 = vcmp.lt.s32.totalorder %v704, 0
        %vm817 = vcmp.lt.s32.totalorder %v711, 0
        %vm818 = vcmp.lt.s32.totalorder %v718, 0
        %vm819 = vcmp.lt.s32.totalorder %v725, 0
        %vm820 = vcmp.lt.s32.totalorder %v732, 0
        %vm821 = vcmp.lt.s32.totalorder %v739, 0
        %vm822 = vcmp.lt.s32.totalorder %v746, 0
        %vm823 = vcmp.lt.s32.totalorder %v753, 0
        %vm824 = vcmp.lt.s32.totalorder %v760, 0
        %vm825 = vmand %vm793, %vm761
        %vm826 = vmand %vm794, %vm762
        %vm827 = vmand %vm795, %vm763
        %vm828 = vmand %vm796, %vm764
        %vm829 = vmand %vm797, %vm765
        %vm830 = vmand %vm798, %vm766
        %vm831 = vmand %vm799, %vm767
        %vm832 = vmand %vm800, %vm768
        %vm833 = vmand %vm801, %vm769
        %vm834 = vmand %vm802, %vm770
        %vm835 = vmand %vm803, %vm771
        %vm836 = vmand %vm804, %vm772
        %vm837 = vmand %vm805, %vm773
        %vm838 = vmand %vm806, %vm774
        %vm839 = vmand %vm807, %vm775
        %vm840 = vmand %vm808, %vm776
        %vm841 = vmand %vm809, %vm777
        %vm842 = vmand %vm810, %vm778
        %vm843 = vmand %vm811, %vm779
        %vm844 = vmand %vm812, %vm780
        %vm845 = vmand %vm813, %vm781
        %vm846 = vmand %vm814, %vm782
        %vm847 = vmand %vm815, %vm783
        %vm848 = vmand %vm816, %vm784
        %vm849 = vmand %vm817, %vm785
        %vm850 = vmand %vm818, %vm786
        %vm851 = vmand %vm819, %vm787
        %vm852 = vmand %vm820, %vm788
        %vm853 = vmand %vm821, %vm789
        %vm854 = vmand %vm822, %vm790
        %vm855 = vmand %vm823, %vm791
        %vm856 = vmand %vm824, %vm792
        %v857 = vadd.s32 %v543, 16
        %v858 = vadd.s32 %v550, 16
        %v859 = vadd.s32 %v557, 16
        %v860 = vadd.s32 %v564, 16
        %v861 = vadd.s32 %v571, 16
        %v862 = vadd.s32 %v578, 16
        %v863 = vadd.s32 %v585, 16
        %v864 = vadd.s32 %v592, 16
        %v865 = vadd.s32 %v599, 16
        %v866 = vadd.s32 %v606, 16
        %v867 = vadd.s32 %v613, 16
        %v868 = vadd.s32 %v620, 16
        %v869 = vadd.s32 %v627, 16
        %v870 = vadd.s32 %v634, 16
        %v871 = vadd.s32 %v641, 16
        %v872 = vadd.s32 %v648, 16
        %v873 = vadd.s32 %v655, 16
        %v874 = vadd.s32 %v662, 16
        %v875 = vadd.s32 %v669, 16
        %v876 = vadd.s32 %v676, 16
        %v877 = vadd.s32 %v683, 16
        %v878 = vadd.s32 %v690, 16
        %v879 = vadd.s32 %v697, 16
        %v880 = vadd.s32 %v704, 16
        %v881 = vadd.s32 %v711, 16
        %v882 = vadd.s32 %v718, 16
        %v883 = vadd.s32 %v725, 16
        %v884 = vadd.s32 %v732, 16
        %v885 = vadd.s32 %v739, 16
        %v886 = vadd.s32 %v746, 16
        %v887 = vadd.s32 %v753, 16
        %v888 = vadd.s32 %v760, 16
        %v889 = vsel %vm825, %v857, %v543
        %v890 = vsel %vm826, %v858, %v550
        %v891 = vsel %vm827, %v859, %v557
        %v892 = vsel %vm828, %v860, %v564
        %v893 = vsel %vm829, %v861, %v571
        %v894 = vsel %vm830, %v862, %v578
        %v895 = vsel %vm831, %v863, %v585
        %v896 = vsel %vm832, %v864, %v592
        %v897 = vsel %vm833, %v865, %v599
        %v898 = vsel %vm834, %v866, %v606
        %v899 = vsel %vm835, %v867, %v613
        %v900 = vsel %vm836, %v868, %v620
        %v901 = vsel %vm837, %v869, %v627
        %v902 = vsel %vm838, %v870, %v634
        %v903 = vsel %vm839, %v871, %v641
        %v904 = vsel %vm840, %v872, %v648
        %v905 = vsel %vm841, %v873, %v655
        %v906 = vsel %vm842, %v874, %v662
        %v907 = vsel %vm843, %v875, %v669
        %v908 = vsel %vm844, %v876, %v676
        %v909 = vsel %vm845, %v877, %v683
        %v910 = vsel %vm846, %v878, %v690
        %v911 = vsel %vm847, %v879, %v697
        %v912 = vsel %vm848, %v880, %v704
        %v913 = vsel %vm849, %v881, %v711
        %v914 = vsel %vm850, %v882, %v718
        %v915 = vsel %vm851, %v883, %v725
        %v916 = vsel %vm852, %v884, %v732
        %v917 = vsel %vm853, %v885, %v739
        %v918 = vsel %vm854, %v886, %v746
        %v919 = vsel %vm855, %v887, %v753
        %v920 = vsel %vm856, %v888, %v760
        %vm921 = vcmp.lt.s32.totalorder %v889, 15
        %vm922 = vcmp.lt.s32.totalorder %v890, 15
        %vm923 = vcmp.lt.s32.totalorder %v891, 15
        %vm924 = vcmp.lt.s32.totalorder %v892, 15
        %vm925 = vcmp.lt.s32.totalorder %v893, 15
        %vm926 = vcmp.lt.s32.totalorder %v894, 15
        %vm927 = vcmp.lt.s32.totalorder %v895, 15
        %vm928 = vcmp.lt.s32.totalorder %v896, 15
        %vm929 = vcmp.lt.s32.totalorder %v897, 15
        %vm930 = vcmp.lt.s32.totalorder %v898, 15
        %vm931 = vcmp.lt.s32.totalorder %v899, 15
        %vm932 = vcmp.lt.s32.totalorder %v900, 15
        %vm933 = vcmp.lt.s32.totalorder %v901, 15
        %vm934 = vcmp.lt.s32.totalorder %v902, 15
        %vm935 = vcmp.lt.s32.totalorder %v903, 15
        %vm936 = vcmp.lt.s32.totalorder %v904, 15
        %vm937 = vcmp.lt.s32.totalorder %v905, 15
        %vm938 = vcmp.lt.s32.totalorder %v906, 15
        %vm939 = vcmp.lt.s32.totalorder %v907, 15
        %vm940 = vcmp.lt.s32.totalorder %v908, 15
        %vm941 = vcmp.lt.s32.totalorder %v909, 15
        %vm942 = vcmp.lt.s32.totalorder %v910, 15
        %vm943 = vcmp.lt.s32.totalorder %v911, 15
        %vm944 = vcmp.lt.s32.totalorder %v912, 15
        %vm945 = vcmp.lt.s32.totalorder %v913, 15
        %vm946 = vcmp.lt.s32.totalorder %v914, 15
        %vm947 = vcmp.lt.s32.totalorder %v915, 15
        %vm948 = vcmp.lt.s32.totalorder %v916, 15
        %vm949 = vcmp.lt.s32.totalorder %v917, 15
        %vm950 = vcmp.lt.s32.totalorder %v918, 15
        %vm951 = vcmp.lt.s32.totalorder %v919, 15
        %vm952 = vcmp.lt.s32.totalorder %v920, 15
        %v953 = vsel %vm921, 1, 0
        %v954 = vsel %vm922, 1, 0
        %v955 = vsel %vm923, 1, 0
        %v956 = vsel %vm924, 1, 0
        %v957 = vsel %vm925, 1, 0
        %v958 = vsel %vm926, 1, 0
        %v959 = vsel %vm927, 1, 0
        %v960 = vsel %vm928, 1, 0
        %v961 = vsel %vm929, 1, 0
        %v962 = vsel %vm930, 1, 0
        %v963 = vsel %vm931, 1, 0
        %v964 = vsel %vm932, 1, 0
        %v965 = vsel %vm933, 1, 0
        %v966 = vsel %vm934, 1, 0
        %v967 = vsel %vm935, 1, 0
        %v968 = vsel %vm936, 1, 0
        %v969 = vsel %vm937, 1, 0
        %v970 = vsel %vm938, 1, 0
        %v971 = vsel %vm939, 1, 0
        %v972 = vsel %vm940, 1, 0
        %v973 = vsel %vm941, 1, 0
        %v974 = vsel %vm942, 1, 0
        %v975 = vsel %vm943, 1, 0
        %v976 = vsel %vm944, 1, 0
        %v977 = vsel %vm945, 1, 0
        %v978 = vsel %vm946, 1, 0
        %v979 = vsel %vm947, 1, 0
        %v980 = vsel %vm948, 1, 0
        %v981 = vsel %vm949, 1, 0
        %v982 = vsel %vm950, 1, 0
        %v983 = vsel %vm951, 1, 0
        %v984 = vsel %vm952, 1, 0
        %vm985 = vcmp.eq.s32.totalorder %v953, 1
        %vm986 = vcmp.eq.s32.totalorder %v954, 1
        %vm987 = vcmp.eq.s32.totalorder %v955, 1
        %vm988 = vcmp.eq.s32.totalorder %v956, 1
        %vm989 = vcmp.eq.s32.totalorder %v957, 1
        %vm990 = vcmp.eq.s32.totalorder %v958, 1
        %vm991 = vcmp.eq.s32.totalorder %v959, 1
        %vm992 = vcmp.eq.s32.totalorder %v960, 1
        %vm993 = vcmp.eq.s32.totalorder %v961, 1
        %vm994 = vcmp.eq.s32.totalorder %v962, 1
        %vm995 = vcmp.eq.s32.totalorder %v963, 1
        %vm996 = vcmp.eq.s32.totalorder %v964, 1
        %vm997 = vcmp.eq.s32.totalorder %v965, 1
        %vm998 = vcmp.eq.s32.totalorder %v966, 1
        %vm999 = vcmp.eq.s32.totalorder %v967, 1
        %vm1000 = vcmp.eq.s32.totalorder %v968, 1
        %vm1001 = vcmp.eq.s32.totalorder %v969, 1
        %vm1002 = vcmp.eq.s32.totalorder %v970, 1
        %vm1003 = vcmp.eq.s32.totalorder %v971, 1
        %vm1004 = vcmp.eq.s32.totalorder %v972, 1
        %vm1005 = vcmp.eq.s32.totalorder %v973, 1
        %vm1006 = vcmp.eq.s32.totalorder %v974, 1
        %vm1007 = vcmp.eq.s32.totalorder %v975, 1
        %vm1008 = vcmp.eq.s32.totalorder %v976, 1
        %vm1009 = vcmp.eq.s32.totalorder %v977, 1
        %vm1010 = vcmp.eq.s32.totalorder %v978, 1
        %vm1011 = vcmp.eq.s32.totalorder %v979, 1
        %vm1012 = vcmp.eq.s32.totalorder %v980, 1
        %vm1013 = vcmp.eq.s32.totalorder %v981, 1
        %vm1014 = vcmp.eq.s32.totalorder %v982, 1
        %vm1015 = vcmp.eq.s32.totalorder %v983, 1
        %vm1016 = vcmp.eq.s32.totalorder %v984, 1
        %v1017 = vsel %vm985, %v472, 0.0
        %v1018 = vsel %vm986, %v473, 0.0
        %v1019 = vsel %vm987, %v474, 0.0
        %v1020 = vsel %vm988, %v475, 0.0
        %v1021 = vsel %vm989, %v476, 0.0
        %v1022 = vsel %vm990, %v477, 0.0
        %v1023 = vsel %vm991, %v478, 0.0
        %v1024 = vsel %vm992, %v479, 0.0
        %v1025 = vsel %vm993, %v480, 0.0
        %v1026 = vsel %vm994, %v481, 0.0
        %v1027 = vsel %vm995, %v482, 0.0
        %v1028 = vsel %vm996, %v483, 0.0
        %v1029 = vsel %vm997, %v484, 0.0
        %v1030 = vsel %vm998, %v485, 0.0
        %v1031 = vsel %vm999, %v486, 0.0
        %v1032 = vsel %vm1000, %v487, 0.0
        %v1033 = vsel %vm1001, %v488, 0.0
        %v1034 = vsel %vm1002, %v489, 0.0
        %v1035 = vsel %vm1003, %v490, 0.0
        %v1036 = vsel %vm1004, %v491, 0.0
        %v1037 = vsel %vm1005, %v492, 0.0
        %v1038 = vsel %vm1006, %v493, 0.0
        %v1039 = vsel %vm1007, %v494, 0.0
        %v1040 = vsel %vm1008, %v495, 0.0
        %v1041 = vsel %vm1009, %v496, 0.0
        %v1042 = vsel %vm1010, %v497, 0.0
        %v1043 = vsel %vm1011, %v498, 0.0
        %v1044 = vsel %vm1012, %v499, 0.0
        %v1045 = vsel %vm1013, %v500, 0.0
        %v1046 = vsel %vm1014, %v501, 0.0
        %v1047 = vsel %vm1015, %v502, 0.0
        %v1048 = vsel %vm1016, %v503, 0.0
        %vm1049 = vcmp.ge.s32.totalorder %v889, 1
        %vm1050 = vcmp.ge.s32.totalorder %v890, 1
        %vm1051 = vcmp.ge.s32.totalorder %v891, 1
        %vm1052 = vcmp.ge.s32.totalorder %v892, 1
        %vm1053 = vcmp.ge.s32.totalorder %v893, 1
        %vm1054 = vcmp.ge.s32.totalorder %v894, 1
        %vm1055 = vcmp.ge.s32.totalorder %v895, 1
        %vm1056 = vcmp.ge.s32.totalorder %v896, 1
        %vm1057 = vcmp.ge.s32.totalorder %v897, 1
        %vm1058 = vcmp.ge.s32.totalorder %v898, 1
        %vm1059 = vcmp.ge.s32.totalorder %v899, 1
        %vm1060 = vcmp.ge.s32.totalorder %v900, 1
        %vm1061 = vcmp.ge.s32.totalorder %v901, 1
        %vm1062 = vcmp.ge.s32.totalorder %v902, 1
        %vm1063 = vcmp.ge.s32.totalorder %v903, 1
        %vm1064 = vcmp.ge.s32.totalorder %v904, 1
        %vm1065 = vcmp.ge.s32.totalorder %v905, 1
        %vm1066 = vcmp.ge.s32.totalorder %v906, 1
        %vm1067 = vcmp.ge.s32.totalorder %v907, 1
        %vm1068 = vcmp.ge.s32.totalorder %v908, 1
        %vm1069 = vcmp.ge.s32.totalorder %v909, 1
        %vm1070 = vcmp.ge.s32.totalorder %v910, 1
        %vm1071 = vcmp.ge.s32.totalorder %v911, 1
        %vm1072 = vcmp.ge.s32.totalorder %v912, 1
        %vm1073 = vcmp.ge.s32.totalorder %v913, 1
        %vm1074 = vcmp.ge.s32.totalorder %v914, 1
        %vm1075 = vcmp.ge.s32.totalorder %v915, 1
        %vm1076 = vcmp.ge.s32.totalorder %v916, 1
        %vm1077 = vcmp.ge.s32.totalorder %v917, 1
        %vm1078 = vcmp.ge.s32.totalorder %v918, 1
        %vm1079 = vcmp.ge.s32.totalorder %v919, 1
        %vm1080 = vcmp.ge.s32.totalorder %v920, 1
        %v1081 = vsel %vm1049, 1, 0
        %v1082 = vsel %vm1050, 1, 0
        %v1083 = vsel %vm1051, 1, 0
        %v1084 = vsel %vm1052, 1, 0
        %v1085 = vsel %vm1053, 1, 0
        %v1086 = vsel %vm1054, 1, 0
        %v1087 = vsel %vm1055, 1, 0
        %v1088 = vsel %vm1056, 1, 0
        %v1089 = vsel %vm1057, 1, 0
        %v1090 = vsel %vm1058, 1, 0
        %v1091 = vsel %vm1059, 1, 0
        %v1092 = vsel %vm1060, 1, 0
        %v1093 = vsel %vm1061, 1, 0
        %v1094 = vsel %vm1062, 1, 0
        %v1095 = vsel %vm1063, 1, 0
        %v1096 = vsel %vm1064, 1, 0
        %v1097 = vsel %vm1065, 1, 0
        %v1098 = vsel %vm1066, 1, 0
        %v1099 = vsel %vm1067, 1, 0
        %v1100 = vsel %vm1068, 1, 0
        %v1101 = vsel %vm1069, 1, 0
        %v1102 = vsel %vm1070, 1, 0
        %v1103 = vsel %vm1071, 1, 0
        %v1104 = vsel %vm1072, 1, 0
        %v1105 = vsel %vm1073, 1, 0
        %v1106 = vsel %vm1074, 1, 0
        %v1107 = vsel %vm1075, 1, 0
        %v1108 = vsel %vm1076, 1, 0
        %v1109 = vsel %vm1077, 1, 0
        %v1110 = vsel %vm1078, 1, 0
        %v1111 = vsel %vm1079, 1, 0
        %v1112 = vsel %vm1080, 1, 0
        %vm1113 = vcmp.eq.s32.totalorder %v1081, 1
        %vm1114 = vcmp.eq.s32.totalorder %v1082, 1
        %vm1115 = vcmp.eq.s32.totalorder %v1083, 1
        %vm1116 = vcmp.eq.s32.totalorder %v1084, 1
        %vm1117 = vcmp.eq.s32.totalorder %v1085, 1
        %vm1118 = vcmp.eq.s32.totalorder %v1086, 1
        %vm1119 = vcmp.eq.s32.totalorder %v1087, 1
        %vm1120 = vcmp.eq.s32.totalorder %v1088, 1
        %vm1121 = vcmp.eq.s32.totalorder %v1089, 1
        %vm1122 = vcmp.eq.s32.totalorder %v1090, 1
        %vm1123 = vcmp.eq.s32.totalorder %v1091, 1
        %vm1124 = vcmp.eq.s32.totalorder %v1092, 1
        %vm1125 = vcmp.eq.s32.totalorder %v1093, 1
        %vm1126 = vcmp.eq.s32.totalorder %v1094, 1
        %vm1127 = vcmp.eq.s32.totalorder %v1095, 1
        %vm1128 = vcmp.eq.s32.totalorder %v1096, 1
        %vm1129 = vcmp.eq.s32.totalorder %v1097, 1
        %vm1130 = vcmp.eq.s32.totalorder %v1098, 1
        %vm1131 = vcmp.eq.s32.totalorder %v1099, 1
        %vm1132 = vcmp.eq.s32.totalorder %v1100, 1
        %vm1133 = vcmp.eq.s32.totalorder %v1101, 1
        %vm1134 = vcmp.eq.s32.totalorder %v1102, 1
        %vm1135 = vcmp.eq.s32.totalorder %v1103, 1
        %vm1136 = vcmp.eq.s32.totalorder %v1104, 1
        %vm1137 = vcmp.eq.s32.totalorder %v1105, 1
        %vm1138 = vcmp.eq.s32.totalorder %v1106, 1
        %vm1139 = vcmp.eq.s32.totalorder %v1107, 1
        %vm1140 = vcmp.eq.s32.totalorder %v1108, 1
        %vm1141 = vcmp.eq.s32.totalorder %v1109, 1
        %vm1142 = vcmp.eq.s32.totalorder %v1110, 1
        %vm1143 = vcmp.eq.s32.totalorder %v1111, 1
        %vm1144 = vcmp.eq.s32.totalorder %v1112, 1
        %v1145 = vsel %vm1113, %v472, 0.0
        %v1146 = vsel %vm1114, %v473, 0.0
        %v1147 = vsel %vm1115, %v474, 0.0
        %v1148 = vsel %vm1116, %v475, 0.0
        %v1149 = vsel %vm1117, %v476, 0.0
        %v1150 = vsel %vm1118, %v477, 0.0
        %v1151 = vsel %vm1119, %v478, 0.0
        %v1152 = vsel %vm1120, %v479, 0.0
        %v1153 = vsel %vm1121, %v480, 0.0
        %v1154 = vsel %vm1122, %v481, 0.0
        %v1155 = vsel %vm1123, %v482, 0.0
        %v1156 = vsel %vm1124, %v483, 0.0
        %v1157 = vsel %vm1125, %v484, 0.0
        %v1158 = vsel %vm1126, %v485, 0.0
        %v1159 = vsel %vm1127, %v486, 0.0
        %v1160 = vsel %vm1128, %v487, 0.0
        %v1161 = vsel %vm1129, %v488, 0.0
        %v1162 = vsel %vm1130, %v489, 0.0
        %v1163 = vsel %vm1131, %v490, 0.0
        %v1164 = vsel %vm1132, %v491, 0.0
        %v1165 = vsel %vm1133, %v492, 0.0
        %v1166 = vsel %vm1134, %v493, 0.0
        %v1167 = vsel %vm1135, %v494, 0.0
        %v1168 = vsel %vm1136, %v495, 0.0
        %v1169 = vsel %vm1137, %v496, 0.0
        %v1170 = vsel %vm1138, %v497, 0.0
        %v1171 = vsel %vm1139, %v498, 0.0
        %v1172 = vsel %vm1140, %v499, 0.0
        %v1173 = vsel %vm1141, %v500, 0.0
        %v1174 = vsel %vm1142, %v501, 0.0
        %v1175 = vsel %vm1143, %v502, 0.0
        %v1176 = vsel %vm1144, %v503, 0.0
        %vm1208 = vcmask 1046528
        %v1209 = vrot.slane 0.0, 1
        %v1210 = vsel %vm1208, %v1209, %v1209
        %v1211 = vrot.slane %v472, 1
        %v1212 = vsel %vm1208, %v1209, %v1211
        %v1213 = vrot.slane %v473, 1
        %v1214 = vsel %vm1208, %v1211, %v1213
        %v1215 = vrot.slane %v474, 1
        %v1216 = vsel %vm1208, %v1213, %v1215
        %v1217 = vrot.slane %v475, 1
        %v1218 = vsel %vm1208, %v1215, %v1217
        %v1219 = vrot.slane %v476, 1
        %v1220 = vsel %vm1208, %v1217, %v1219
        %v1221 = vrot.slane %v477, 1
        %v1222 = vsel %vm1208, %v1219, %v1221
        %v1223 = vrot.slane %v478, 1
        %v1224 = vsel %vm1208, %v1221, %v1223
        %v1225 = vrot.slane %v479, 1
        %v1226 = vsel %vm1208, %v1223, %v1225
        %v1227 = vrot.slane %v480, 1
        %v1228 = vsel %vm1208, %v1225, %v1227
        %v1229 = vrot.slane %v481, 1
        %v1230 = vsel %vm1208, %v1227, %v1229
        %v1231 = vrot.slane %v482, 1
        %v1232 = vsel %vm1208, %v1229, %v1231
        %v1233 = vrot.slane %v483, 1
        %v1234 = vsel %vm1208, %v1231, %v1233
        %v1235 = vrot.slane %v484, 1
        %v1236 = vsel %vm1208, %v1233, %v1235
        %v1237 = vrot.slane %v485, 1
        %v1238 = vsel %vm1208, %v1235, %v1237
        %v1239 = vrot.slane %v486, 1
        %v1240 = vsel %vm1208, %v1237, %v1239
        %v1241 = vrot.slane %v487, 1
        %v1242 = vsel %vm1208, %v1239, %v1241
        %v1243 = vrot.slane %v488, 1
        %v1244 = vsel %vm1208, %v1241, %v1243
        %v1245 = vrot.slane %v489, 1
        %v1246 = vsel %vm1208, %v1243, %v1245
        %v1247 = vrot.slane %v490, 1
        %v1248 = vsel %vm1208, %v1245, %v1247
        %v1249 = vrot.slane %v491, 1
        %v1250 = vsel %vm1208, %v1247, %v1249
        %v1251 = vrot.slane %v492, 1
        %v1252 = vsel %vm1208, %v1249, %v1251
        %v1253 = vrot.slane %v493, 1
        %v1254 = vsel %vm1208, %v1251, %v1253
        %v1255 = vrot.slane %v494, 1
        %v1256 = vsel %vm1208, %v1253, %v1255
        %v1257 = vrot.slane %v495, 1
        %v1258 = vsel %vm1208, %v1255, %v1257
        %v1259 = vrot.slane %v496, 1
        %v1260 = vsel %vm1208, %v1257, %v1259
        %v1261 = vrot.slane %v497, 1
        %v1262 = vsel %vm1208, %v1259, %v1261
        %v1263 = vrot.slane %v498, 1
        %v1264 = vsel %vm1208, %v1261, %v1263
        %v1265 = vrot.slane %v499, 1
        %v1266 = vsel %vm1208, %v1263, %v1265
        %v1267 = vrot.slane %v500, 1
        %v1268 = vsel %vm1208, %v1265, %v1267
        %v1269 = vrot.slane %v501, 1
        %v1270 = vsel %vm1208, %v1267, %v1269
        %1271 = vrot.lane.b32.xlu0 %v1209, 32
        %v1272 = vpop.permute.xlu0 %1271
        %1273 = vrot.lane.b32.xlu0 %v1210, 32
        %v1274 = vpop.permute.xlu0 %1273
        %1275 = vrot.lane.b32.xlu0 %v1212, 32
        %v1276 = vpop.permute.xlu0 %1275
        %1277 = vrot.lane.b32.xlu0 %v1214, 32
        %v1278 = vpop.permute.xlu0 %1277
        %1279 = vrot.lane.b32.xlu0 %v1216, 32
        %v1280 = vpop.permute.xlu0 %1279
        %1281 = vrot.lane.b32.xlu0 %v1218, 32
        %v1282 = vpop.permute.xlu0 %1281
        %1283 = vrot.lane.b32.xlu0 %v1220, 32
        %v1284 = vpop.permute.xlu0 %1283
        %1285 = vrot.lane.b32.xlu0 %v1222, 32
        %v1286 = vpop.permute.xlu0 %1285
        %1287 = vrot.lane.b32.xlu0 %v1224, 32
        %v1288 = vpop.permute.xlu0 %1287
        %1289 = vrot.lane.b32.xlu0 %v1226, 32
        %v1290 = vpop.permute.xlu0 %1289
        %1291 = vrot.lane.b32.xlu0 %v1228, 32
        %v1292 = vpop.permute.xlu0 %1291
        %1293 = vrot.lane.b32.xlu0 %v1230, 32
        %v1294 = vpop.permute.xlu0 %1293
        %1295 = vrot.lane.b32.xlu0 %v1232, 32
        %v1296 = vpop.permute.xlu0 %1295
        %1297 = vrot.lane.b32.xlu0 %v1234, 32
        %v1298 = vpop.permute.xlu0 %1297
        %1299 = vrot.lane.b32.xlu0 %v1236, 32
        %v1300 = vpop.permute.xlu0 %1299
        %1301 = vrot.lane.b32.xlu0 %v1238, 32
        %v1302 = vpop.permute.xlu0 %1301
        %1303 = vrot.lane.b32.xlu0 %v1240, 32
        %v1304 = vpop.permute.xlu0 %1303
        %1305 = vrot.lane.b32.xlu0 %v1242, 32
        %v1306 = vpop.permute.xlu0 %1305
        %1307 = vrot.lane.b32.xlu0 %v1244, 32
        %v1308 = vpop.permute.xlu0 %1307
        %1309 = vrot.lane.b32.xlu0 %v1246, 32
        %v1310 = vpop.permute.xlu0 %1309
        %1311 = vrot.lane.b32.xlu0 %v1248, 32
        %v1312 = vpop.permute.xlu0 %1311
        %1313 = vrot.lane.b32.xlu0 %v1250, 32
        %v1314 = vpop.permute.xlu0 %1313
        %1315 = vrot.lane.b32.xlu0 %v1252, 32
        %v1316 = vpop.permute.xlu0 %1315
        %1317 = vrot.lane.b32.xlu0 %v1254, 32
        %v1318 = vpop.permute.xlu0 %1317
        %1319 = vrot.lane.b32.xlu0 %v1256, 32
        %v1320 = vpop.permute.xlu0 %1319
        %1321 = vrot.lane.b32.xlu0 %v1258, 32
        %v1322 = vpop.permute.xlu0 %1321
        %1323 = vrot.lane.b32.xlu0 %v1260, 32
        %v1324 = vpop.permute.xlu0 %1323
        %1325 = vrot.lane.b32.xlu0 %v1262, 32
        %v1326 = vpop.permute.xlu0 %1325
        %1327 = vrot.lane.b32.xlu0 %v1264, 32
        %v1328 = vpop.permute.xlu0 %1327
        %1329 = vrot.lane.b32.xlu0 %v1266, 32
        %v1330 = vpop.permute.xlu0 %1329
        %1331 = vrot.lane.b32.xlu0 %v1268, 32
        %v1332 = vpop.permute.xlu0 %1331
        %1333 = vrot.lane.b32.xlu0 %v1270, 32
        %v1334 = vpop.permute.xlu0 %1333
        %1335 = vrot.lane.b32.xlu0 %v1269, 32
        %v1336 = vpop.permute.xlu0 %1335
        %vm1401 = vcmask 1045504
        %v1402 = vrot.slane 0.0, 2
        %v1403 = vsel %vm1401, %v1402, %v1402
        %v1404 = vrot.slane %v1145, 2
        %v1405 = vsel %vm1401, %v1402, %v1404
        %v1406 = vrot.slane %v1146, 2
        %v1407 = vsel %vm1401, %v1404, %v1406
        %v1408 = vrot.slane %v1147, 2
        %v1409 = vsel %vm1401, %v1406, %v1408
        %v1410 = vrot.slane %v1148, 2
        %v1411 = vsel %vm1401, %v1408, %v1410
        %v1412 = vrot.slane %v1149, 2
        %v1413 = vsel %vm1401, %v1410, %v1412
        %v1414 = vrot.slane %v1150, 2
        %v1415 = vsel %vm1401, %v1412, %v1414
        %v1416 = vrot.slane %v1151, 2
        %v1417 = vsel %vm1401, %v1414, %v1416
        %v1418 = vrot.slane %v1152, 2
        %v1419 = vsel %vm1401, %v1416, %v1418
        %v1420 = vrot.slane %v1153, 2
        %v1421 = vsel %vm1401, %v1418, %v1420
        %v1422 = vrot.slane %v1154, 2
        %v1423 = vsel %vm1401, %v1420, %v1422
        %v1424 = vrot.slane %v1155, 2
        %v1425 = vsel %vm1401, %v1422, %v1424
        %v1426 = vrot.slane %v1156, 2
        %v1427 = vsel %vm1401, %v1424, %v1426
        %v1428 = vrot.slane %v1157, 2
        %v1429 = vsel %vm1401, %v1426, %v1428
        %v1430 = vrot.slane %v1158, 2
        %v1431 = vsel %vm1401, %v1428, %v1430
        %v1432 = vrot.slane %v1159, 2
        %v1433 = vsel %vm1401, %v1430, %v1432
        %v1434 = vrot.slane %v1160, 2
        %v1435 = vsel %vm1401, %v1432, %v1434
        %v1436 = vrot.slane %v1161, 2
        %v1437 = vsel %vm1401, %v1434, %v1436
        %v1438 = vrot.slane %v1162, 2
        %v1439 = vsel %vm1401, %v1436, %v1438
        %v1440 = vrot.slane %v1163, 2
        %v1441 = vsel %vm1401, %v1438, %v1440
        %v1442 = vrot.slane %v1164, 2
        %v1443 = vsel %vm1401, %v1440, %v1442
        %v1444 = vrot.slane %v1165, 2
        %v1445 = vsel %vm1401, %v1442, %v1444
        %v1446 = vrot.slane %v1166, 2
        %v1447 = vsel %vm1401, %v1444, %v1446
        %v1448 = vrot.slane %v1167, 2
        %v1449 = vsel %vm1401, %v1446, %v1448
        %v1450 = vrot.slane %v1168, 2
        %v1451 = vsel %vm1401, %v1448, %v1450
        %v1452 = vrot.slane %v1169, 2
        %v1453 = vsel %vm1401, %v1450, %v1452
        %v1454 = vrot.slane %v1170, 2
        %v1455 = vsel %vm1401, %v1452, %v1454
        %v1456 = vrot.slane %v1171, 2
        %v1457 = vsel %vm1401, %v1454, %v1456
        %v1458 = vrot.slane %v1172, 2
        %v1459 = vsel %vm1401, %v1456, %v1458
        %v1460 = vrot.slane %v1173, 2
        %v1461 = vsel %vm1401, %v1458, %v1460
        %v1462 = vrot.slane %v1174, 2
        %v1463 = vsel %vm1401, %v1460, %v1462
        %v1464 = vrot.slane %v1175, 2
        %v1465 = vsel %vm1401, %v1462, %v1464
        %1466 = vrot.lane.b32.xlu0 %v1402, 64
        %v1467 = vpop.permute.xlu0 %1466
        %1468 = vrot.lane.b32.xlu0 %v1403, 64
        %v1469 = vpop.permute.xlu0 %1468
        %1470 = vrot.lane.b32.xlu0 %v1405, 64
        %v1471 = vpop.permute.xlu0 %1470
        %1472 = vrot.lane.b32.xlu0 %v1407, 64
        %v1473 = vpop.permute.xlu0 %1472
        %1474 = vrot.lane.b32.xlu0 %v1409, 64
        %v1475 = vpop.permute.xlu0 %1474
        %1476 = vrot.lane.b32.xlu0 %v1411, 64
        %v1477 = vpop.permute.xlu0 %1476
        %1478 = vrot.lane.b32.xlu0 %v1413, 64
        %v1479 = vpop.permute.xlu0 %1478
        %1480 = vrot.lane.b32.xlu0 %v1415, 64
        %v1481 = vpop.permute.xlu0 %1480
        %1482 = vrot.lane.b32.xlu0 %v1417, 64
        %v1483 = vpop.permute.xlu0 %1482
        %1484 = vrot.lane.b32.xlu0 %v1419, 64
        %v1485 = vpop.permute.xlu0 %1484
        %1486 = vrot.lane.b32.xlu0 %v1421, 64
        %v1487 = vpop.permute.xlu0 %1486
        %1488 = vrot.lane.b32.xlu0 %v1423, 64
        %v1489 = vpop.permute.xlu0 %1488
        %1490 = vrot.lane.b32.xlu0 %v1425, 64
        %v1491 = vpop.permute.xlu0 %1490
        %1492 = vrot.lane.b32.xlu0 %v1427, 64
        %v1493 = vpop.permute.xlu0 %1492
        %1494 = vrot.lane.b32.xlu0 %v1429, 64
        %v1495 = vpop.permute.xlu0 %1494
        %1496 = vrot.lane.b32.xlu0 %v1431, 64
        %v1497 = vpop.permute.xlu0 %1496
        %1498 = vrot.lane.b32.xlu0 %v1433, 64
        %v1499 = vpop.permute.xlu0 %1498
        %1500 = vrot.lane.b32.xlu0 %v1435, 64
        %v1501 = vpop.permute.xlu0 %1500
        %1502 = vrot.lane.b32.xlu0 %v1437, 64
        %v1503 = vpop.permute.xlu0 %1502
        %1504 = vrot.lane.b32.xlu0 %v1439, 64
        %v1505 = vpop.permute.xlu0 %1504
        %1506 = vrot.lane.b32.xlu0 %v1441, 64
        %v1507 = vpop.permute.xlu0 %1506
        %1508 = vrot.lane.b32.xlu0 %v1443, 64
        %v1509 = vpop.permute.xlu0 %1508
        %1510 = vrot.lane.b32.xlu0 %v1445, 64
        %v1511 = vpop.permute.xlu0 %1510
        %1512 = vrot.lane.b32.xlu0 %v1447, 64
        %v1513 = vpop.permute.xlu0 %1512
        %1514 = vrot.lane.b32.xlu0 %v1449, 64
        %v1515 = vpop.permute.xlu0 %1514
        %1516 = vrot.lane.b32.xlu0 %v1451, 64
        %v1517 = vpop.permute.xlu0 %1516
        %1518 = vrot.lane.b32.xlu0 %v1453, 64
        %v1519 = vpop.permute.xlu0 %1518
        %1520 = vrot.lane.b32.xlu0 %v1455, 64
        %v1521 = vpop.permute.xlu0 %1520
        %1522 = vrot.lane.b32.xlu0 %v1457, 64
        %v1523 = vpop.permute.xlu0 %1522
        %1524 = vrot.lane.b32.xlu0 %v1459, 64
        %v1525 = vpop.permute.xlu0 %1524
        %1526 = vrot.lane.b32.xlu0 %v1461, 64
        %v1527 = vpop.permute.xlu0 %1526
        %1528 = vrot.lane.b32.xlu0 %v1463, 64
        %v1529 = vpop.permute.xlu0 %1528
        %1530 = vrot.lane.b32.xlu0 %v1465, 64
        %v1531 = vpop.permute.xlu0 %1530
        %1597 = vrot.lane.b32.xlu0 0.0, 96
        %v1598 = vpop.permute.xlu0 %1597
        %1599 = vrot.lane.b32.xlu0 %v1017, 96
        %v1600 = vpop.permute.xlu0 %1599
        %1601 = vrot.lane.b32.xlu0 %v1018, 96
        %v1602 = vpop.permute.xlu0 %1601
        %1603 = vrot.lane.b32.xlu0 %v1019, 96
        %v1604 = vpop.permute.xlu0 %1603
        %1605 = vrot.lane.b32.xlu0 %v1020, 96
        %v1606 = vpop.permute.xlu0 %1605
        %1607 = vrot.lane.b32.xlu0 %v1021, 96
        %v1608 = vpop.permute.xlu0 %1607
        %1609 = vrot.lane.b32.xlu0 %v1022, 96
        %v1610 = vpop.permute.xlu0 %1609
        %1611 = vrot.lane.b32.xlu0 %v1023, 96
        %v1612 = vpop.permute.xlu0 %1611
        %1613 = vrot.lane.b32.xlu0 %v1024, 96
        %v1614 = vpop.permute.xlu0 %1613
        %1615 = vrot.lane.b32.xlu0 %v1025, 96
        %v1616 = vpop.permute.xlu0 %1615
        %1617 = vrot.lane.b32.xlu0 %v1026, 96
        %v1618 = vpop.permute.xlu0 %1617
        %1619 = vrot.lane.b32.xlu0 %v1027, 96
        %v1620 = vpop.permute.xlu0 %1619
        %1621 = vrot.lane.b32.xlu0 %v1028, 96
        %v1622 = vpop.permute.xlu0 %1621
        %1623 = vrot.lane.b32.xlu0 %v1029, 96
        %v1624 = vpop.permute.xlu0 %1623
        %1625 = vrot.lane.b32.xlu0 %v1030, 96
        %v1626 = vpop.permute.xlu0 %1625
        %1627 = vrot.lane.b32.xlu0 %v1031, 96
        %v1628 = vpop.permute.xlu0 %1627
        %1629 = vrot.lane.b32.xlu0 %v1032, 96
        %v1630 = vpop.permute.xlu0 %1629
        %1631 = vrot.lane.b32.xlu0 %v1033, 96
        %v1632 = vpop.permute.xlu0 %1631
        %1633 = vrot.lane.b32.xlu0 %v1034, 96
        %v1634 = vpop.permute.xlu0 %1633
        %1635 = vrot.lane.b32.xlu0 %v1035, 96
        %v1636 = vpop.permute.xlu0 %1635
        %1637 = vrot.lane.b32.xlu0 %v1036, 96
        %v1638 = vpop.permute.xlu0 %1637
        %1639 = vrot.lane.b32.xlu0 %v1037, 96
        %v1640 = vpop.permute.xlu0 %1639
        %1641 = vrot.lane.b32.xlu0 %v1038, 96
        %v1642 = vpop.permute.xlu0 %1641
        %1643 = vrot.lane.b32.xlu0 %v1039, 96
        %v1644 = vpop.permute.xlu0 %1643
        %1645 = vrot.lane.b32.xlu0 %v1040, 96
        %v1646 = vpop.permute.xlu0 %1645
        %1647 = vrot.lane.b32.xlu0 %v1041, 96
        %v1648 = vpop.permute.xlu0 %1647
        %1649 = vrot.lane.b32.xlu0 %v1042, 96
        %v1650 = vpop.permute.xlu0 %1649
        %1651 = vrot.lane.b32.xlu0 %v1043, 96
        %v1652 = vpop.permute.xlu0 %1651
        %1653 = vrot.lane.b32.xlu0 %v1044, 96
        %v1654 = vpop.permute.xlu0 %1653
        %1655 = vrot.lane.b32.xlu0 %v1045, 96
        %v1656 = vpop.permute.xlu0 %1655
        %1657 = vrot.lane.b32.xlu0 %v1046, 96
        %v1658 = vpop.permute.xlu0 %1657
        %1659 = vrot.lane.b32.xlu0 %v1047, 96
        %v1660 = vpop.permute.xlu0 %1659
        %1661 = vrot.lane.b32.xlu0 %v1048, 96
        %v1662 = vpop.permute.xlu0 %1661
        %v1698 = vrot.slane %v502, 1
        %v1699 = vsel %vm1208, %v1269, %v1698
        %v1700 = vrot.slane %v503, 1
        %v1701 = vsel %vm1208, %v1698, %v1700
        %v1736 = vrot.slane %v1176, 2
        %v1737 = vsel %vm1401, %v1464, %v1736
        %v1738 = vsel %vm1401, %v1736, %v1402
        %1739 = vrot.lane.b32.xlu0 %v1404, 32
        %v1740 = vpop.permute.xlu0 %1739
        %1741 = vrot.lane.b32.xlu0 %v1407, 32
        %v1742 = vpop.permute.xlu0 %1741
        %1743 = vrot.lane.b32.xlu0 %v1409, 32
        %v1744 = vpop.permute.xlu0 %1743
        %1745 = vrot.lane.b32.xlu0 %v1411, 32
        %v1746 = vpop.permute.xlu0 %1745
        %1747 = vrot.lane.b32.xlu0 %v1413, 32
        %v1748 = vpop.permute.xlu0 %1747
        %1749 = vrot.lane.b32.xlu0 %v1415, 32
        %v1750 = vpop.permute.xlu0 %1749
        %1751 = vrot.lane.b32.xlu0 %v1417, 32
        %v1752 = vpop.permute.xlu0 %1751
        %1753 = vrot.lane.b32.xlu0 %v1419, 32
        %v1754 = vpop.permute.xlu0 %1753
        %1755 = vrot.lane.b32.xlu0 %v1421, 32
        %v1756 = vpop.permute.xlu0 %1755
        %1757 = vrot.lane.b32.xlu0 %v1423, 32
        %v1758 = vpop.permute.xlu0 %1757
        %1759 = vrot.lane.b32.xlu0 %v1425, 32
        %v1760 = vpop.permute.xlu0 %1759
        %1761 = vrot.lane.b32.xlu0 %v1427, 32
        %v1762 = vpop.permute.xlu0 %1761
        %1763 = vrot.lane.b32.xlu0 %v1429, 32
        %v1764 = vpop.permute.xlu0 %1763
        %1765 = vrot.lane.b32.xlu0 %v1431, 32
        %v1766 = vpop.permute.xlu0 %1765
        %1767 = vrot.lane.b32.xlu0 %v1433, 32
        %v1768 = vpop.permute.xlu0 %1767
        %1769 = vrot.lane.b32.xlu0 %v1435, 32
        %v1770 = vpop.permute.xlu0 %1769
        %1771 = vrot.lane.b32.xlu0 %v1437, 32
        %v1772 = vpop.permute.xlu0 %1771
        %1773 = vrot.lane.b32.xlu0 %v1439, 32
        %v1774 = vpop.permute.xlu0 %1773
        %1775 = vrot.lane.b32.xlu0 %v1441, 32
        %v1776 = vpop.permute.xlu0 %1775
        %1777 = vrot.lane.b32.xlu0 %v1443, 32
        %v1778 = vpop.permute.xlu0 %1777
        %1779 = vrot.lane.b32.xlu0 %v1445, 32
        %v1780 = vpop.permute.xlu0 %1779
        %1781 = vrot.lane.b32.xlu0 %v1447, 32
        %v1782 = vpop.permute.xlu0 %1781
        %1783 = vrot.lane.b32.xlu0 %v1449, 32
        %v1784 = vpop.permute.xlu0 %1783
        %1785 = vrot.lane.b32.xlu0 %v1451, 32
        %v1786 = vpop.permute.xlu0 %1785
        %1787 = vrot.lane.b32.xlu0 %v1453, 32
        %v1788 = vpop.permute.xlu0 %1787
        %1789 = vrot.lane.b32.xlu0 %v1455, 32
        %v1790 = vpop.permute.xlu0 %1789
        %1791 = vrot.lane.b32.xlu0 %v1457, 32
        %v1792 = vpop.permute.xlu0 %1791
        %1793 = vrot.lane.b32.xlu0 %v1459, 32
        %v1794 = vpop.permute.xlu0 %1793
        %1795 = vrot.lane.b32.xlu0 %v1461, 32
        %v1796 = vpop.permute.xlu0 %1795
        %1797 = vrot.lane.b32.xlu0 %v1463, 32
        %v1798 = vpop.permute.xlu0 %1797
        %1799 = vrot.lane.b32.xlu0 %v1465, 32
        %v1800 = vpop.permute.xlu0 %1799
        %1801 = vrot.lane.b32.xlu0 %v1737, 32
        %v1802 = vpop.permute.xlu0 %1801
        %1803 = vrot.lane.b32.xlu0 %v1738, 32
        %v1804 = vpop.permute.xlu0 %1803
        %1838 = vrot.lane.b32.xlu0 %v1018, 64
        %v1839 = vpop.permute.xlu0 %1838
        %1840 = vrot.lane.b32.xlu0 %v1019, 64
        %v1841 = vpop.permute.xlu0 %1840
        %1842 = vrot.lane.b32.xlu0 %v1020, 64
        %v1843 = vpop.permute.xlu0 %1842
        %1844 = vrot.lane.b32.xlu0 %v1021, 64
        %v1845 = vpop.permute.xlu0 %1844
        %1846 = vrot.lane.b32.xlu0 %v1022, 64
        %v1847 = vpop.permute.xlu0 %1846
        %1848 = vrot.lane.b32.xlu0 %v1023, 64
        %v1849 = vpop.permute.xlu0 %1848
        %1850 = vrot.lane.b32.xlu0 %v1024, 64
        %v1851 = vpop.permute.xlu0 %1850
        %1852 = vrot.lane.b32.xlu0 %v1025, 64
        %v1853 = vpop.permute.xlu0 %1852
        %1854 = vrot.lane.b32.xlu0 %v1026, 64
        %v1855 = vpop.permute.xlu0 %1854
        %1856 = vrot.lane.b32.xlu0 %v1027, 64
        %v1857 = vpop.permute.xlu0 %1856
        %1858 = vrot.lane.b32.xlu0 %v1028, 64
        %v1859 = vpop.permute.xlu0 %1858
        %1860 = vrot.lane.b32.xlu0 %v1029, 64
        %v1861 = vpop.permute.xlu0 %1860
        %1862 = vrot.lane.b32.xlu0 %v1030, 64
        %v1863 = vpop.permute.xlu0 %1862
        %1864 = vrot.lane.b32.xlu0 %v1031, 64
        %v1865 = vpop.permute.xlu0 %1864
        %1866 = vrot.lane.b32.xlu0 %v1032, 64
        %v1867 = vpop.permute.xlu0 %1866
        %1868 = vrot.lane.b32.xlu0 %v1033, 64
        %v1869 = vpop.permute.xlu0 %1868
        %1870 = vrot.lane.b32.xlu0 %v1034, 64
        %v1871 = vpop.permute.xlu0 %1870
        %1872 = vrot.lane.b32.xlu0 %v1035, 64
        %v1873 = vpop.permute.xlu0 %1872
        %1874 = vrot.lane.b32.xlu0 %v1036, 64
        %v1875 = vpop.permute.xlu0 %1874
        %1876 = vrot.lane.b32.xlu0 %v1037, 64
        %v1877 = vpop.permute.xlu0 %1876
        %1878 = vrot.lane.b32.xlu0 %v1038, 64
        %v1879 = vpop.permute.xlu0 %1878
        %1880 = vrot.lane.b32.xlu0 %v1039, 64
        %v1881 = vpop.permute.xlu0 %1880
        %1882 = vrot.lane.b32.xlu0 %v1040, 64
        %v1883 = vpop.permute.xlu0 %1882
        %1884 = vrot.lane.b32.xlu0 %v1041, 64
        %v1885 = vpop.permute.xlu0 %1884
        %1886 = vrot.lane.b32.xlu0 %v1042, 64
        %v1887 = vpop.permute.xlu0 %1886
        %1888 = vrot.lane.b32.xlu0 %v1043, 64
        %v1889 = vpop.permute.xlu0 %1888
        %1890 = vrot.lane.b32.xlu0 %v1044, 64
        %v1891 = vpop.permute.xlu0 %1890
        %1892 = vrot.lane.b32.xlu0 %v1045, 64
        %v1893 = vpop.permute.xlu0 %1892
        %1894 = vrot.lane.b32.xlu0 %v1046, 64
        %v1895 = vpop.permute.xlu0 %1894
        %1896 = vrot.lane.b32.xlu0 %v1047, 64
        %v1897 = vpop.permute.xlu0 %1896
        %1898 = vrot.lane.b32.xlu0 %v1048, 64
        %v1899 = vpop.permute.xlu0 %1898
        %1900 = vrot.lane.b32.xlu0 0.0, 64
        %v1901 = vpop.permute.xlu0 %1900
        %v1934 = vsel %vm1208, %v1700, %v1209
        %1935 = vrot.lane.b32.xlu0 %v1215, 96
        %v1936 = vpop.permute.xlu0 %1935
        %1937 = vrot.lane.b32.xlu0 %v1218, 96
        %v1938 = vpop.permute.xlu0 %1937
        %1939 = vrot.lane.b32.xlu0 %v1220, 96
        %v1940 = vpop.permute.xlu0 %1939
        %1941 = vrot.lane.b32.xlu0 %v1222, 96
        %v1942 = vpop.permute.xlu0 %1941
        %1943 = vrot.lane.b32.xlu0 %v1224, 96
        %v1944 = vpop.permute.xlu0 %1943
        %1945 = vrot.lane.b32.xlu0 %v1226, 96
        %v1946 = vpop.permute.xlu0 %1945
        %1947 = vrot.lane.b32.xlu0 %v1228, 96
        %v1948 = vpop.permute.xlu0 %1947
        %1949 = vrot.lane.b32.xlu0 %v1230, 96
        %v1950 = vpop.permute.xlu0 %1949
        %1951 = vrot.lane.b32.xlu0 %v1232, 96
        %v1952 = vpop.permute.xlu0 %1951
        %1953 = vrot.lane.b32.xlu0 %v1234, 96
        %v1954 = vpop.permute.xlu0 %1953
        %1955 = vrot.lane.b32.xlu0 %v1236, 96
        %v1956 = vpop.permute.xlu0 %1955
        %1957 = vrot.lane.b32.xlu0 %v1238, 96
        %v1958 = vpop.permute.xlu0 %1957
        %1959 = vrot.lane.b32.xlu0 %v1240, 96
        %v1960 = vpop.permute.xlu0 %1959
        %1961 = vrot.lane.b32.xlu0 %v1242, 96
        %v1962 = vpop.permute.xlu0 %1961
        %1963 = vrot.lane.b32.xlu0 %v1244, 96
        %v1964 = vpop.permute.xlu0 %1963
        %1965 = vrot.lane.b32.xlu0 %v1246, 96
        %v1966 = vpop.permute.xlu0 %1965
        %1967 = vrot.lane.b32.xlu0 %v1248, 96
        %v1968 = vpop.permute.xlu0 %1967
        %1969 = vrot.lane.b32.xlu0 %v1250, 96
        %v1970 = vpop.permute.xlu0 %1969
        %1971 = vrot.lane.b32.xlu0 %v1252, 96
        %v1972 = vpop.permute.xlu0 %1971
        %1973 = vrot.lane.b32.xlu0 %v1254, 96
        %v1974 = vpop.permute.xlu0 %1973
        %1975 = vrot.lane.b32.xlu0 %v1256, 96
        %v1976 = vpop.permute.xlu0 %1975
        %1977 = vrot.lane.b32.xlu0 %v1258, 96
        %v1978 = vpop.permute.xlu0 %1977
        %1979 = vrot.lane.b32.xlu0 %v1260, 96
        %v1980 = vpop.permute.xlu0 %1979
        %1981 = vrot.lane.b32.xlu0 %v1262, 96
        %v1982 = vpop.permute.xlu0 %1981
        %1983 = vrot.lane.b32.xlu0 %v1264, 96
        %v1984 = vpop.permute.xlu0 %1983
        %1985 = vrot.lane.b32.xlu0 %v1266, 96
        %v1986 = vpop.permute.xlu0 %1985
        %1987 = vrot.lane.b32.xlu0 %v1268, 96
        %v1988 = vpop.permute.xlu0 %1987
        %1989 = vrot.lane.b32.xlu0 %v1270, 96
        %v1990 = vpop.permute.xlu0 %1989
        %1991 = vrot.lane.b32.xlu0 %v1699, 96
        %v1992 = vpop.permute.xlu0 %1991
        %1993 = vrot.lane.b32.xlu0 %v1701, 96
        %v1994 = vpop.permute.xlu0 %1993
        %1995 = vrot.lane.b32.xlu0 %v1934, 96
        %v1996 = vpop.permute.xlu0 %1995
        %1997 = vrot.lane.b32.xlu0 %v1210, 96
        %v1998 = vpop.permute.xlu0 %1997
        %1999 = vrot.lane.b32.xlu0 %v1209, 96
        %v2000 = vpop.permute.xlu0 %1999
        %vm2034 = vcmask 261120
        %v2035 = vsel %vm2034, 0.0, %v1272
        %v2036 = vsel %vm2034, 0.0, %v1274
        %v2037 = vsel %vm2034, 0.0, %v1276
        %v2038 = vsel %vm2034, %v1017, %v1278
        %v2039 = vsel %vm2034, %v1018, %v1280
        %v2040 = vsel %vm2034, %v1019, %v1282
        %v2041 = vsel %vm2034, %v1020, %v1284
        %v2042 = vsel %vm2034, %v1021, %v1286
        %v2043 = vsel %vm2034, %v1022, %v1288
        %v2044 = vsel %vm2034, %v1023, %v1290
        %v2045 = vsel %vm2034, %v1024, %v1292
        %v2046 = vsel %vm2034, %v1025, %v1294
        %v2047 = vsel %vm2034, %v1026, %v1296
        %v2048 = vsel %vm2034, %v1027, %v1298
        %v2049 = vsel %vm2034, %v1028, %v1300
        %v2050 = vsel %vm2034, %v1029, %v1302
        %v2051 = vsel %vm2034, %v1030, %v1304
        %v2052 = vsel %vm2034, %v1031, %v1306
        %v2053 = vsel %vm2034, %v1032, %v1308
        %v2054 = vsel %vm2034, %v1033, %v1310
        %v2055 = vsel %vm2034, %v1034, %v1312
        %v2056 = vsel %vm2034, %v1035, %v1314
        %v2057 = vsel %vm2034, %v1036, %v1316
        %v2058 = vsel %vm2034, %v1037, %v1318
        %v2059 = vsel %vm2034, %v1038, %v1320
        %v2060 = vsel %vm2034, %v1039, %v1322
        %v2061 = vsel %vm2034, %v1040, %v1324
        %v2062 = vsel %vm2034, %v1041, %v1326
        %v2063 = vsel %vm2034, %v1042, %v1328
        %v2064 = vsel %vm2034, %v1043, %v1330
        %v2065 = vsel %vm2034, %v1044, %v1332
        %v2066 = vsel %vm2034, %v1045, %v1334
        %v2067 = vsel %vm2034, %v1046, %v1336
        %vm2068 = vcmask 523264
        %v2069 = vsel %vm2068, %v2035, %v1467
        %v2070 = vsel %vm2068, %v2036, %v1469
        %v2071 = vsel %vm2068, %v2037, %v1471
        %v2072 = vsel %vm2068, %v2038, %v1473
        %v2073 = vsel %vm2068, %v2039, %v1475
        %v2074 = vsel %vm2068, %v2040, %v1477
        %v2075 = vsel %vm2068, %v2041, %v1479
        %v2076 = vsel %vm2068, %v2042, %v1481
        %v2077 = vsel %vm2068, %v2043, %v1483
        %v2078 = vsel %vm2068, %v2044, %v1485
        %v2079 = vsel %vm2068, %v2045, %v1487
        %v2080 = vsel %vm2068, %v2046, %v1489
        %v2081 = vsel %vm2068, %v2047, %v1491
        %v2082 = vsel %vm2068, %v2048, %v1493
        %v2083 = vsel %vm2068, %v2049, %v1495
        %v2084 = vsel %vm2068, %v2050, %v1497
        %v2085 = vsel %vm2068, %v2051, %v1499
        %v2086 = vsel %vm2068, %v2052, %v1501
        %v2087 = vsel %vm2068, %v2053, %v1503
        %v2088 = vsel %vm2068, %v2054, %v1505
        %v2089 = vsel %vm2068, %v2055, %v1507
        %v2090 = vsel %vm2068, %v2056, %v1509
        %v2091 = vsel %vm2068, %v2057, %v1511
        %v2092 = vsel %vm2068, %v2058, %v1513
        %v2093 = vsel %vm2068, %v2059, %v1515
        %v2094 = vsel %vm2068, %v2060, %v1517
        %v2095 = vsel %vm2068, %v2061, %v1519
        %v2096 = vsel %vm2068, %v2062, %v1521
        %v2097 = vsel %vm2068, %v2063, %v1523
        %v2098 = vsel %vm2068, %v2064, %v1525
        %v2099 = vsel %vm2068, %v2065, %v1527
        %v2100 = vsel %vm2068, %v2066, %v1529
        %v2101 = vsel %vm2068, %v2067, %v1531
        %vm2102 = vcmask 785408
        %v2103 = vsel %vm2102, %v2069, %v1598
        %v2104 = vsel %vm2102, %v2070, %v1600
        %v2105 = vsel %vm2102, %v2071, %v1602
        %v2106 = vsel %vm2102, %v2072, %v1604
        %v2107 = vsel %vm2102, %v2073, %v1606
        %v2108 = vsel %vm2102, %v2074, %v1608
        %v2109 = vsel %vm2102, %v2075, %v1610
        %v2110 = vsel %vm2102, %v2076, %v1612
        %v2111 = vsel %vm2102, %v2077, %v1614
        %v2112 = vsel %vm2102, %v2078, %v1616
        %v2113 = vsel %vm2102, %v2079, %v1618
        %v2114 = vsel %vm2102, %v2080, %v1620
        %v2115 = vsel %vm2102, %v2081, %v1622
        %v2116 = vsel %vm2102, %v2082, %v1624
        %v2117 = vsel %vm2102, %v2083, %v1626
        %v2118 = vsel %vm2102, %v2084, %v1628
        %v2119 = vsel %vm2102, %v2085, %v1630
        %v2120 = vsel %vm2102, %v2086, %v1632
        %v2121 = vsel %vm2102, %v2087, %v1634
        %v2122 = vsel %vm2102, %v2088, %v1636
        %v2123 = vsel %vm2102, %v2089, %v1638
        %v2124 = vsel %vm2102, %v2090, %v1640
        %v2125 = vsel %vm2102, %v2091, %v1642
        %v2126 = vsel %vm2102, %v2092, %v1644
        %v2127 = vsel %vm2102, %v2093, %v1646
        %v2128 = vsel %vm2102, %v2094, %v1648
        %v2129 = vsel %vm2102, %v2095, %v1650
        %v2130 = vsel %vm2102, %v2096, %v1652
        %v2131 = vsel %vm2102, %v2097, %v1654
        %v2132 = vsel %vm2102, %v2098, %v1656
        %v2133 = vsel %vm2102, %v2099, %v1658
        %v2134 = vsel %vm2102, %v2100, %v1660
        %v2135 = vsel %vm2102, %v2101, %v1662
        %v2136 = vsel %vm2034, %v1211, %v1740
        %v2137 = vsel %vm2034, %v1214, %v1742
        %v2138 = vsel %vm2034, %v1216, %v1744
        %v2139 = vsel %vm2034, %v1218, %v1746
        %v2140 = vsel %vm2034, %v1220, %v1748
        %v2141 = vsel %vm2034, %v1222, %v1750
        %v2142 = vsel %vm2034, %v1224, %v1752
        %v2143 = vsel %vm2034, %v1226, %v1754
        %v2144 = vsel %vm2034, %v1228, %v1756
        %v2145 = vsel %vm2034, %v1230, %v1758
        %v2146 = vsel %vm2034, %v1232, %v1760
        %v2147 = vsel %vm2034, %v1234, %v1762
        %v2148 = vsel %vm2034, %v1236, %v1764
        %v2149 = vsel %vm2034, %v1238, %v1766
        %v2150 = vsel %vm2034, %v1240, %v1768
        %v2151 = vsel %vm2034, %v1242, %v1770
        %v2152 = vsel %vm2034, %v1244, %v1772
        %v2153 = vsel %vm2034, %v1246, %v1774
        %v2154 = vsel %vm2034, %v1248, %v1776
        %v2155 = vsel %vm2034, %v1250, %v1778
        %v2156 = vsel %vm2034, %v1252, %v1780
        %v2157 = vsel %vm2034, %v1254, %v1782
        %v2158 = vsel %vm2034, %v1256, %v1784
        %v2159 = vsel %vm2034, %v1258, %v1786
        %v2160 = vsel %vm2034, %v1260, %v1788
        %v2161 = vsel %vm2034, %v1262, %v1790
        %v2162 = vsel %vm2034, %v1264, %v1792
        %v2163 = vsel %vm2034, %v1266, %v1794
        %v2164 = vsel %vm2034, %v1268, %v1796
        %v2165 = vsel %vm2034, %v1270, %v1798
        %v2166 = vsel %vm2034, %v1699, %v1800
        %v2167 = vsel %vm2034, %v1701, %v1802
        %v2168 = vsel %vm2034, %v1700, %v1804
        %v2169 = vsel %vm2068, %v2136, %v1839
        %v2170 = vsel %vm2068, %v2137, %v1841
        %v2171 = vsel %vm2068, %v2138, %v1843
        %v2172 = vsel %vm2068, %v2139, %v1845
        %v2173 = vsel %vm2068, %v2140, %v1847
        %v2174 = vsel %vm2068, %v2141, %v1849
        %v2175 = vsel %vm2068, %v2142, %v1851
        %v2176 = vsel %vm2068, %v2143, %v1853
        %v2177 = vsel %vm2068, %v2144, %v1855
        %v2178 = vsel %vm2068, %v2145, %v1857
        %v2179 = vsel %vm2068, %v2146, %v1859
        %v2180 = vsel %vm2068, %v2147, %v1861
        %v2181 = vsel %vm2068, %v2148, %v1863
        %v2182 = vsel %vm2068, %v2149, %v1865
        %v2183 = vsel %vm2068, %v2150, %v1867
        %v2184 = vsel %vm2068, %v2151, %v1869
        %v2185 = vsel %vm2068, %v2152, %v1871
        %v2186 = vsel %vm2068, %v2153, %v1873
        %v2187 = vsel %vm2068, %v2154, %v1875
        %v2188 = vsel %vm2068, %v2155, %v1877
        %v2189 = vsel %vm2068, %v2156, %v1879
        %v2190 = vsel %vm2068, %v2157, %v1881
        %v2191 = vsel %vm2068, %v2158, %v1883
        %v2192 = vsel %vm2068, %v2159, %v1885
        %v2193 = vsel %vm2068, %v2160, %v1887
        %v2194 = vsel %vm2068, %v2161, %v1889
        %v2195 = vsel %vm2068, %v2162, %v1891
        %v2196 = vsel %vm2068, %v2163, %v1893
        %v2197 = vsel %vm2068, %v2164, %v1895
        %v2198 = vsel %vm2068, %v2165, %v1897
        %v2199 = vsel %vm2068, %v2166, %v1899
        %v2200 = vsel %vm2068, %v2167, %v1901
        %v2201 = vsel %vm2068, %v2168, %v1901
        %v2202 = vsel %vm2102, %v2169, %v1936
        %v2203 = vsel %vm2102, %v2170, %v1938
        %v2204 = vsel %vm2102, %v2171, %v1940
        %v2205 = vsel %vm2102, %v2172, %v1942
        %v2206 = vsel %vm2102, %v2173, %v1944
        %v2207 = vsel %vm2102, %v2174, %v1946
        %v2208 = vsel %vm2102, %v2175, %v1948
        %v2209 = vsel %vm2102, %v2176, %v1950
        %v2210 = vsel %vm2102, %v2177, %v1952
        %v2211 = vsel %vm2102, %v2178, %v1954
        %v2212 = vsel %vm2102, %v2179, %v1956
        %v2213 = vsel %vm2102, %v2180, %v1958
        %v2214 = vsel %vm2102, %v2181, %v1960
        %v2215 = vsel %vm2102, %v2182, %v1962
        %v2216 = vsel %vm2102, %v2183, %v1964
        %v2217 = vsel %vm2102, %v2184, %v1966
        %v2218 = vsel %vm2102, %v2185, %v1968
        %v2219 = vsel %vm2102, %v2186, %v1970
        %v2220 = vsel %vm2102, %v2187, %v1972
        %v2221 = vsel %vm2102, %v2188, %v1974
        %v2222 = vsel %vm2102, %v2189, %v1976
        %v2223 = vsel %vm2102, %v2190, %v1978
        %v2224 = vsel %vm2102, %v2191, %v1980
        %v2225 = vsel %vm2102, %v2192, %v1982
        %v2226 = vsel %vm2102, %v2193, %v1984
        %v2227 = vsel %vm2102, %v2194, %v1986
        %v2228 = vsel %vm2102, %v2195, %v1988
        %v2229 = vsel %vm2102, %v2196, %v1990
        %v2230 = vsel %vm2102, %v2197, %v1992
        %v2231 = vsel %vm2102, %v2198, %v1994
        %v2232 = vsel %vm2102, %v2199, %v1996
        %v2233 = vsel %vm2102, %v2200, %v1998
        %v2234 = vsel %vm2102, %v2201, %v2000
        %v2235 = vld [vmem:[%s3] sm:$0xff]
        %v2236 = vld [vmem:[%s3 + $0x8] sm:$0xff]
        %v2237 = vld [vmem:[%s3 + $0x10] sm:$0xff]
        %v2238 = vld [vmem:[%s3 + $0x18] sm:$0xff]
        %v2239 = vld [vmem:[%s3 + $0x20] sm:$0xff]
        %v2240 = vld [vmem:[%s3 + $0x28] sm:$0xff]
        %v2241 = vld [vmem:[%s3 + $0x30] sm:$0xff]
        %v2242 = vld [vmem:[%s3 + $0x38] sm:$0xff]
        %v2243 = vld [vmem:[%s3 + $0x40] sm:$0xff]
        %v2244 = vld [vmem:[%s3 + $0x48] sm:$0xff]
        %v2245 = vld [vmem:[%s3 + $0x50] sm:$0xff]
        %v2246 = vld [vmem:[%s3 + $0x58] sm:$0xff]
        %v2247 = vld [vmem:[%s3 + $0x60] sm:$0xff]
        %v2248 = vld [vmem:[%s3 + $0x68] sm:$0xff]
        %v2249 = vld [vmem:[%s3 + $0x70] sm:$0xff]
        %v2250 = vld [vmem:[%s3 + $0x78] sm:$0xff]
        %v2251 = vld [vmem:[%s3 + $0x80] sm:$0xff]
        %v2252 = vld [vmem:[%s3 + $0x88] sm:$0xff]
        %v2253 = vld [vmem:[%s3 + $0x90] sm:$0xff]
        %v2254 = vld [vmem:[%s3 + $0x98] sm:$0xff]
        %v2255 = vld [vmem:[%s3 + $0xa0] sm:$0xff]
        %v2256 = vld [vmem:[%s3 + $0xa8] sm:$0xff]
        %v2257 = vld [vmem:[%s3 + $0xb0] sm:$0xff]
        %v2258 = vld [vmem:[%s3 + $0xb8] sm:$0xff]
        %v2259 = vld [vmem:[%s3 + $0xc0] sm:$0xff]
        %v2260 = vld [vmem:[%s3 + $0xc8] sm:$0xff]
        %v2261 = vld [vmem:[%s3 + $0xd0] sm:$0xff]
        %v2262 = vld [vmem:[%s3 + $0xd8] sm:$0xff]
        %v2263 = vld [vmem:[%s3 + $0xe0] sm:$0xff]
        %v2264 = vld [vmem:[%s3 + $0xe8] sm:$0xff]
        %v2265 = vld [vmem:[%s3 + $0xf0] sm:$0xff]
        %v2266 = vld [vmem:[%s3 + $0xf8] sm:$0xff]
        %v2267 = vld [vmem:[%s3 + $0x100] sm:$0xff]
        %v2268 = vld [vmem:[%s3 + $0x108] sm:$0xff]
        %v2269 = vld [vmem:[%s3 + $0x110] sm:$0xff]
        %v2270 = vld [vmem:[%s3 + $0x118] sm:$0xff]
        %v2271 = vld [vmem:[#allocation5] sm:$0x1]
        %v2273 = vperm.slane %v2271, 0
        %vm2341 = vcmask 1040384
        %v2342 = vrot.slane %v2103, 7
        %v2343 = vrot.slane %v2104, 7
        %v2344 = vsel %vm2341, %v2342, %v2343
        %v2345 = vrot.slane %v2202, 7
        %v2346 = vrot.slane %v2203, 7
        %v2347 = vsel %vm2341, %v2345, %v2346
        %v2348 = vrot.slane %v1408, 7
        %v2349 = vrot.slane %v1411, 7
        %v2350 = vsel %vm2341, %v2348, %v2349
        %v2351 = vrot.slane %v2105, 7
        %v2352 = vsel %vm2341, %v2343, %v2351
        %v2353 = vrot.slane %v2204, 7
        %v2354 = vsel %vm2341, %v2346, %v2353
        %v2355 = vrot.slane %v1413, 7
        %v2356 = vsel %vm2341, %v2349, %v2355
        %v2357 = vrot.slane %v2106, 7
        %v2358 = vsel %vm2341, %v2351, %v2357
        %v2359 = vrot.slane %v2205, 7
        %v2360 = vsel %vm2341, %v2353, %v2359
        %v2361 = vrot.slane %v1415, 7
        %v2362 = vsel %vm2341, %v2355, %v2361
        %v2363 = vrot.slane %v2107, 7
        %v2364 = vsel %vm2341, %v2357, %v2363
        %v2365 = vrot.slane %v2206, 7
        %v2366 = vsel %vm2341, %v2359, %v2365
        %v2367 = vrot.slane %v1417, 7
        %v2368 = vsel %vm2341, %v2361, %v2367
        %v2369 = vrot.slane %v2108, 7
        %v2370 = vsel %vm2341, %v2363, %v2369
        %v2371 = vrot.slane %v2207, 7
        %v2372 = vsel %vm2341, %v2365, %v2371
        %v2373 = vrot.slane %v1419, 7
        %v2374 = vsel %vm2341, %v2367, %v2373
        %v2375 = vrot.slane %v2109, 7
        %v2376 = vsel %vm2341, %v2369, %v2375
        %v2377 = vrot.slane %v2208, 7
        %v2378 = vsel %vm2341, %v2371, %v2377
        %v2379 = vrot.slane %v1421, 7
        %v2380 = vsel %vm2341, %v2373, %v2379
        %v2381 = vrot.slane %v2110, 7
        %v2382 = vsel %vm2341, %v2375, %v2381
        %v2383 = vrot.slane %v2209, 7
        %v2384 = vsel %vm2341, %v2377, %v2383
        %v2385 = vrot.slane %v1423, 7
        %v2386 = vsel %vm2341, %v2379, %v2385
        %v2387 = vrot.slane %v2111, 7
        %v2388 = vsel %vm2341, %v2381, %v2387
        %v2389 = vrot.slane %v2210, 7
        %v2390 = vsel %vm2341, %v2383, %v2389
        %v2391 = vrot.slane %v1425, 7
        %v2392 = vsel %vm2341, %v2385, %v2391
        %v2393 = vrot.slane %v2112, 7
        %v2394 = vsel %vm2341, %v2387, %v2393
        %v2395 = vrot.slane %v2211, 7
        %v2396 = vsel %vm2341, %v2389, %v2395
        %v2397 = vrot.slane %v1427, 7
        %v2398 = vsel %vm2341, %v2391, %v2397
        %v2399 = vrot.slane %v2113, 7
        %v2400 = vsel %vm2341, %v2393, %v2399
        %v2401 = vrot.slane %v2212, 7
        %v2402 = vsel %vm2341, %v2395, %v2401
        %v2403 = vrot.slane %v1429, 7
        %v2404 = vsel %vm2341, %v2397, %v2403
        %v2405 = vrot.slane %v2114, 7
        %v2406 = vsel %vm2341, %v2399, %v2405
        %v2407 = vrot.slane %v2213, 7
        %v2408 = vsel %vm2341, %v2401, %v2407
        %v2409 = vrot.slane %v1431, 7
        %v2410 = vsel %vm2341, %v2403, %v2409
        %v2411 = vrot.slane %v2115, 7
        %v2412 = vsel %vm2341, %v2405, %v2411
        %v2413 = vrot.slane %v2214, 7
        %v2414 = vsel %vm2341, %v2407, %v2413
        %v2415 = vrot.slane %v1433, 7
        %v2416 = vsel %vm2341, %v2409, %v2415
        %v2417 = vrot.slane %v2116, 7
        %v2418 = vsel %vm2341, %v2411, %v2417
        %v2419 = vrot.slane %v2215, 7
        %v2420 = vsel %vm2341, %v2413, %v2419
        %v2421 = vrot.slane %v1435, 7
        %v2422 = vsel %vm2341, %v2415, %v2421
        %v2423 = vrot.slane %v2117, 7
        %v2424 = vsel %vm2341, %v2417, %v2423
        %v2425 = vrot.slane %v2216, 7
        %v2426 = vsel %vm2341, %v2419, %v2425
        %v2427 = vrot.slane %v1437, 7
        %v2428 = vsel %vm2341, %v2421, %v2427
        %v2429 = vrot.slane %v2118, 7
        %v2430 = vsel %vm2341, %v2423, %v2429
        %v2431 = vrot.slane %v2217, 7
        %v2432 = vsel %vm2341, %v2425, %v2431
        %v2433 = vrot.slane %v1439, 7
        %v2434 = vsel %vm2341, %v2427, %v2433
        %v2435 = vrot.slane %v2119, 7
        %v2436 = vsel %vm2341, %v2429, %v2435
        %v2437 = vrot.slane %v2218, 7
        %v2438 = vsel %vm2341, %v2431, %v2437
        %v2439 = vrot.slane %v1441, 7
        %v2440 = vsel %vm2341, %v2433, %v2439
        %v2441 = vrot.slane %v2120, 7
        %v2442 = vsel %vm2341, %v2435, %v2441
        %v2443 = vrot.slane %v2219, 7
        %v2444 = vsel %vm2341, %v2437, %v2443
        %v2445 = vrot.slane %v1443, 7
        %v2446 = vsel %vm2341, %v2439, %v2445
        %v2447 = vrot.slane %v2121, 7
        %v2448 = vsel %vm2341, %v2441, %v2447
        %v2449 = vrot.slane %v2220, 7
        %v2450 = vsel %vm2341, %v2443, %v2449
        %v2451 = vrot.slane %v1445, 7
        %v2452 = vsel %vm2341, %v2445, %v2451
        %v2453 = vrot.slane %v2122, 7
        %v2454 = vsel %vm2341, %v2447, %v2453
        %v2455 = vrot.slane %v2221, 7
        %v2456 = vsel %vm2341, %v2449, %v2455
        %v2457 = vrot.slane %v1447, 7
        %v2458 = vsel %vm2341, %v2451, %v2457
        %v2459 = vrot.slane %v2123, 7
        %v2460 = vsel %vm2341, %v2453, %v2459
        %v2461 = vrot.slane %v2222, 7
        %v2462 = vsel %vm2341, %v2455, %v2461
        %v2463 = vrot.slane %v1449, 7
        %v2464 = vsel %vm2341, %v2457, %v2463
        %v2465 = vrot.slane %v2124, 7
        %v2466 = vsel %vm2341, %v2459, %v2465
        %v2467 = vrot.slane %v2223, 7
        %v2468 = vsel %vm2341, %v2461, %v2467
        %v2469 = vrot.slane %v1451, 7
        %v2470 = vsel %vm2341, %v2463, %v2469
        %v2471 = vrot.slane %v2125, 7
        %v2472 = vsel %vm2341, %v2465, %v2471
        %v2473 = vrot.slane %v2224, 7
        %v2474 = vsel %vm2341, %v2467, %v2473
        %v2475 = vrot.slane %v1453, 7
        %v2476 = vsel %vm2341, %v2469, %v2475
        %v2477 = vrot.slane %v2126, 7
        %v2478 = vsel %vm2341, %v2471, %v2477
        %v2479 = vrot.slane %v2225, 7
        %v2480 = vsel %vm2341, %v2473, %v2479
        %v2481 = vrot.slane %v1455, 7
        %v2482 = vsel %vm2341, %v2475, %v2481
        %v2483 = vrot.slane %v2127, 7
        %v2484 = vsel %vm2341, %v2477, %v2483
        %v2485 = vrot.slane %v2226, 7
        %v2486 = vsel %vm2341, %v2479, %v2485
        %v2487 = vrot.slane %v1457, 7
        %v2488 = vsel %vm2341, %v2481, %v2487
        %v2489 = vrot.slane %v2128, 7
        %v2490 = vsel %vm2341, %v2483, %v2489
        %v2491 = vrot.slane %v2227, 7
        %v2492 = vsel %vm2341, %v2485, %v2491
        %v2493 = vrot.slane %v1459, 7
        %v2494 = vsel %vm2341, %v2487, %v2493
        %v2495 = vrot.slane %v2129, 7
        %v2496 = vsel %vm2341, %v2489, %v2495
        %v2497 = vrot.slane %v2228, 7
        %v2498 = vsel %vm2341, %v2491, %v2497
        %v2499 = vrot.slane %v1461, 7
        %v2500 = vsel %vm2341, %v2493, %v2499
        %v2501 = vrot.slane %v2130, 7
        %v2502 = vsel %vm2341, %v2495, %v2501
        %v2503 = vrot.slane %v2229, 7
        %v2504 = vsel %vm2341, %v2497, %v2503
        %v2505 = vrot.slane %v1463, 7
        %v2506 = vsel %vm2341, %v2499, %v2505
        %v2507 = vrot.slane %v2131, 7
        %v2508 = vsel %vm2341, %v2501, %v2507
        %v2509 = vrot.slane %v2230, 7
        %v2510 = vsel %vm2341, %v2503, %v2509
        %v2511 = vrot.slane %v1465, 7
        %v2512 = vsel %vm2341, %v2505, %v2511
        %v2513 = vrot.slane %v2132, 7
        %v2514 = vsel %vm2341, %v2507, %v2513
        %v2515 = vrot.slane %v2231, 7
        %v2516 = vsel %vm2341, %v2509, %v2515
        %v2517 = vrot.slane %v1737, 7
        %v2518 = vsel %vm2341, %v2511, %v2517
        %v2519 = vrot.slane %v2133, 7
        %v2520 = vsel %vm2341, %v2513, %v2519
        %v2521 = vrot.slane %v2232, 7
        %v2522 = vsel %vm2341, %v2515, %v2521
        %v2523 = vrot.slane %v1738, 7
        %v2524 = vsel %vm2341, %v2517, %v2523
        %v2525 = vrot.slane %v2134, 7
        %v2526 = vsel %vm2341, %v2519, %v2525
        %v2527 = vrot.slane %v2233, 7
        %v2528 = vsel %vm2341, %v2521, %v2527
        %v2529 = vrot.slane %v1403, 7
        %v2530 = vsel %vm2341, %v2523, %v2529
        %v2531 = vrot.slane %v2135, 7
        %v2532 = vsel %vm2341, %v2525, %v2531
        %v2533 = vrot.slane %v2234, 7
        %v2534 = vsel %vm2341, %v2527, %v2533
        %v2535 = vsel %vm2341, %v2529, %v2529
        %v2600 = vsel %vm2034, %v2350, 0
        %v2602 = vsel %vm2034, %v2356, 0
        %v2604 = vsel %vm2034, %v2362, 0
        %v2606 = vsel %vm2034, %v2368, 0
        %v2608 = vsel %vm2034, %v2374, 0
        %v2610 = vsel %vm2034, %v2380, 0
        %v2612 = vsel %vm2034, %v2386, 0
        %v2614 = vsel %vm2034, %v2392, 0
        %v2616 = vsel %vm2034, %v2398, 0
        %v2618 = vsel %vm2034, %v2404, 0
        %v2620 = vsel %vm2034, %v2410, 0
        %v2622 = vsel %vm2034, %v2416, 0
        %v2624 = vsel %vm2034, %v2422, 0
        %v2626 = vsel %vm2034, %v2428, 0
        %v2628 = vsel %vm2034, %v2434, 0
        %v2630 = vsel %vm2034, %v2440, 0
        %v2632 = vsel %vm2034, %v2446, 0
        %v2634 = vsel %vm2034, %v2452, 0
        %v2636 = vsel %vm2034, %v2458, 0
        %v2638 = vsel %vm2034, %v2464, 0
        %v2640 = vsel %vm2034, %v2470, 0
        %v2642 = vsel %vm2034, %v2476, 0
        %v2644 = vsel %vm2034, %v2482, 0
        %v2646 = vsel %vm2034, %v2488, 0
        %v2648 = vsel %vm2034, %v2494, 0
        %v2650 = vsel %vm2034, %v2500, 0
        %v2652 = vsel %vm2034, %v2506, 0
        %v2654 = vsel %vm2034, %v2512, 0
        %v2656 = vsel %vm2034, %v2518, 0
        %v2658 = vsel %vm2034, %v2524, 0
        %v2660 = vsel %vm2034, %v2530, 0
        %v2662 = vsel %vm2034, %v2535, 0
        %2664 = vmatpush.msra.mxu0 %v2250
        %2665 = vmatpush.msra.mxu0 %v2249
        %2666 = vmatpush.msra.mxu0 %v2248
        %2667 = vmatpush.msra.mxu0 %v2247
        %2668 = vmatpush.msra.mxu0 %v2246
        %2669 = vmatpush.msra.mxu0 %v2245
        %2670 = vmatpush.msra.mxu0 %v2244
        %2671 = vmatpush.msra.mxu0 %v2243
        %2672 = vmatpush.msra.mxu0 %v2242
        %2673 = vmatpush.msra.mxu0 %v2241
        %2674 = vmatpush.msra.mxu0 %v2240
        %2675 = vmatpush.msra.mxu0 %v2239
        %2676 = vmatpush.msra.mxu0 %v2238
        %2677 = vmatpush.msra.mxu0 %v2237
        %2678 = vmatpush.msra.mxu0 %v2236
        %2679 = vmatpush.msra.mxu0 %v2235
        %2680 = vmatmul.f32.gmra.mxu0 %v2344
        %v2681 = vpop.f32.mrf.mxu0
        %v2682 = vadd.f32 %v2273, %v2681
        %2683 = vmatmul.f32.gmra.mxu0 %v2352
        %v2684 = vpop.f32.mrf.mxu0
        %v2685 = vadd.f32 %v2273, %v2684
        %2686 = vmatmul.f32.gmra.mxu0 %v2358
        %v2687 = vpop.f32.mrf.mxu0
        %v2688 = vadd.f32 %v2273, %v2687
        %2689 = vmatmul.f32.gmra.mxu0 %v2364
        %v2690 = vpop.f32.mrf.mxu0
        %v2691 = vadd.f32 %v2273, %v2690
        %2692 = vmatmul.f32.gmra.mxu0 %v2370
        %v2693 = vpop.f32.mrf.mxu0
        %v2694 = vadd.f32 %v2273, %v2693
        %2695 = vmatmul.f32.gmra.mxu0 %v2376
        %v2696 = vpop.f32.mrf.mxu0
        %v2697 = vadd.f32 %v2273, %v2696
        %2698 = vmatmul.f32.gmra.mxu0 %v2382
        %v2699 = vpop.f32.mrf.mxu0
        %v2700 = vadd.f32 %v2273, %v2699
        %2701 = vmatmul.f32.gmra.mxu0 %v2388
        %v2702 = vpop.f32.mrf.mxu0
        %v2703 = vadd.f32 %v2273, %v2702
        %2704 = vmatmul.f32.gmra.mxu0 %v2394
        %v2705 = vpop.f32.mrf.mxu0
        %v2706 = vadd.f32 %v2273, %v2705
        %2707 = vmatmul.f32.gmra.mxu0 %v2400
        %v2708 = vpop.f32.mrf.mxu0
        %v2709 = vadd.f32 %v2273, %v2708
        %2710 = vmatmul.f32.gmra.mxu0 %v2406
        %v2711 = vpop.f32.mrf.mxu0
        %v2712 = vadd.f32 %v2273, %v2711
        %2713 = vmatmul.f32.gmra.mxu0 %v2412
        %v2714 = vpop.f32.mrf.mxu0
        %v2715 = vadd.f32 %v2273, %v2714
        %2716 = vmatmul.f32.gmra.mxu0 %v2418
        %v2717 = vpop.f32.mrf.mxu0
        %v2718 = vadd.f32 %v2273, %v2717
        %2719 = vmatmul.f32.gmra.mxu0 %v2424
        %v2720 = vpop.f32.mrf.mxu0
        %v2721 = vadd.f32 %v2273, %v2720
        %2722 = vmatmul.f32.gmra.mxu0 %v2430
        %v2723 = vpop.f32.mrf.mxu0
        %v2724 = vadd.f32 %v2273, %v2723
        %2725 = vmatmul.f32.gmra.mxu0 %v2436
        %v2726 = vpop.f32.mrf.mxu0
        %v2727 = vadd.f32 %v2273, %v2726
        %2728 = vmatmul.f32.gmra.mxu0 %v2442
        %v2729 = vpop.f32.mrf.mxu0
        %v2730 = vadd.f32 %v2273, %v2729
        %2731 = vmatmul.f32.gmra.mxu0 %v2448
        %v2732 = vpop.f32.mrf.mxu0
        %v2733 = vadd.f32 %v2273, %v2732
        %2734 = vmatmul.f32.gmra.mxu0 %v2454
        %v2735 = vpop.f32.mrf.mxu0
        %v2736 = vadd.f32 %v2273, %v2735
        %2737 = vmatmul.f32.gmra.mxu0 %v2460
        %v2738 = vpop.f32.mrf.mxu0
        %v2739 = vadd.f32 %v2273, %v2738
        %2740 = vmatmul.f32.gmra.mxu0 %v2466
        %v2741 = vpop.f32.mrf.mxu0
        %v2742 = vadd.f32 %v2273, %v2741
        %2743 = vmatmul.f32.gmra.mxu0 %v2472
        %v2744 = vpop.f32.mrf.mxu0
        %v2745 = vadd.f32 %v2273, %v2744
        %2746 = vmatmul.f32.gmra.mxu0 %v2478
        %v2747 = vpop.f32.mrf.mxu0
        %v2748 = vadd.f32 %v2273, %v2747
        %2749 = vmatmul.f32.gmra.mxu0 %v2484
        %v2750 = vpop.f32.mrf.mxu0
        %v2751 = vadd.f32 %v2273, %v2750
        %2752 = vmatmul.f32.gmra.mxu0 %v2490
        %v2753 = vpop.f32.mrf.mxu0
        %v2754 = vadd.f32 %v2273, %v2753
        %2755 = vmatmul.f32.gmra.mxu0 %v2496
        %v2756 = vpop.f32.mrf.mxu0
        %v2757 = vadd.f32 %v2273, %v2756
        %2758 = vmatmul.f32.gmra.mxu0 %v2502
        %v2759 = vpop.f32.mrf.mxu0
        %v2760 = vadd.f32 %v2273, %v2759
        %2761 = vmatmul.f32.gmra.mxu0 %v2508
        %v2762 = vpop.f32.mrf.mxu0
        %v2763 = vadd.f32 %v2273, %v2762
        %2764 = vmatmul.f32.gmra.mxu0 %v2514
        %v2765 = vpop.f32.mrf.mxu0
        %v2766 = vadd.f32 %v2273, %v2765
        %2767 = vmatmul.f32.gmra.mxu0 %v2520
        %v2768 = vpop.f32.mrf.mxu0
        %v2769 = vadd.f32 %v2273, %v2768
        %2770 = vmatmul.f32.gmra.mxu0 %v2526
        %v2771 = vpop.f32.mrf.mxu0
        %v2772 = vadd.f32 %v2273, %v2771
        %2773 = vmatmul.f32.gmra.mxu0 %v2532
        %v2774 = vpop.f32.mrf.mxu0
        %v2775 = vadd.f32 %v2273, %v2774
        %2776 = vdwg.mxu0
        %2777 = vmatpush.msra.mxu0 %v2266
        %2778 = vmatpush.msra.mxu0 %v2265
        %2779 = vmatpush.msra.mxu0 %v2264
        %2780 = vmatpush.msra.mxu0 %v2263
        %2781 = vmatpush.msra.mxu0 %v2262
        %2782 = vmatpush.msra.mxu0 %v2261
        %2783 = vmatpush.msra.mxu0 %v2260
        %2784 = vmatpush.msra.mxu0 %v2259
        %2785 = vmatpush.msra.mxu0 %v2258
        %2786 = vmatpush.msra.mxu0 %v2257
        %2787 = vmatpush.msra.mxu0 %v2256
        %2788 = vmatpush.msra.mxu0 %v2255
        %2789 = vmatpush.msra.mxu0 %v2254
        %2790 = vmatpush.msra.mxu0 %v2253
        %2791 = vmatpush.msra.mxu0 %v2252
        %2792 = vmatpush.msra.mxu0 %v2251
        %2793 = vmatmul.f32.gmra.mxu0 %v2347
        %v2794 = vpop.f32.mrf.mxu0
        %v2795 = vadd.f32 %v2682, %v2794
        %2796 = vmatmul.f32.gmra.mxu0 %v2354
        %v2797 = vpop.f32.mrf.mxu0
        %v2798 = vadd.f32 %v2685, %v2797
        %2799 = vmatmul.f32.gmra.mxu0 %v2360
        %v2800 = vpop.f32.mrf.mxu0
        %v2801 = vadd.f32 %v2688, %v2800
        %2802 = vmatmul.f32.gmra.mxu0 %v2366
        %v2803 = vpop.f32.mrf.mxu0
        %v2804 = vadd.f32 %v2691, %v2803
        %2805 = vmatmul.f32.gmra.mxu0 %v2372
        %v2806 = vpop.f32.mrf.mxu0
        %v2807 = vadd.f32 %v2694, %v2806
        %2808 = vmatmul.f32.gmra.mxu0 %v2378
        %v2809 = vpop.f32.mrf.mxu0
        %v2810 = vadd.f32 %v2697, %v2809
        %2811 = vmatmul.f32.gmra.mxu0 %v2384
        %v2812 = vpop.f32.mrf.mxu0
        %v2813 = vadd.f32 %v2700, %v2812
        %2814 = vmatmul.f32.gmra.mxu0 %v2390
        %v2815 = vpop.f32.mrf.mxu0
        %v2816 = vadd.f32 %v2703, %v2815
        %2817 = vmatmul.f32.gmra.mxu0 %v2396
        %v2818 = vpop.f32.mrf.mxu0
        %v2819 = vadd.f32 %v2706, %v2818
        %2820 = vmatmul.f32.gmra.mxu0 %v2402
        %v2821 = vpop.f32.mrf.mxu0
        %v2822 = vadd.f32 %v2709, %v2821
        %2823 = vmatmul.f32.gmra.mxu0 %v2408
        %v2824 = vpop.f32.mrf.mxu0
        %v2825 = vadd.f32 %v2712, %v2824
        %2826 = vmatmul.f32.gmra.mxu0 %v2414
        %v2827 = vpop.f32.mrf.mxu0
        %v2828 = vadd.f32 %v2715, %v2827
        %2829 = vmatmul.f32.gmra.mxu0 %v2420
        %v2830 = vpop.f32.mrf.mxu0
        %v2831 = vadd.f32 %v2718, %v2830
        %2832 = vmatmul.f32.gmra.mxu0 %v2426
        %v2833 = vpop.f32.mrf.mxu0
        %v2834 = vadd.f32 %v2721, %v2833
        %2835 = vmatmul.f32.gmra.mxu0 %v2432
        %v2836 = vpop.f32.mrf.mxu0
        %v2837 = vadd.f32 %v2724, %v2836
        %2838 = vmatmul.f32.gmra.mxu0 %v2438
        %v2839 = vpop.f32.mrf.mxu0
        %v2840 = vadd.f32 %v2727, %v2839
        %2841 = vmatmul.f32.gmra.mxu0 %v2444
        %v2842 = vpop.f32.mrf.mxu0
        %v2843 = vadd.f32 %v2730, %v2842
        %2844 = vmatmul.f32.gmra.mxu0 %v2450
        %v2845 = vpop.f32.mrf.mxu0
        %v2846 = vadd.f32 %v2733, %v2845
        %2847 = vmatmul.f32.gmra.mxu0 %v2456
        %v2848 = vpop.f32.mrf.mxu0
        %v2849 = vadd.f32 %v2736, %v2848
        %2850 = vmatmul.f32.gmra.mxu0 %v2462
        %v2851 = vpop.f32.mrf.mxu0
        %v2852 = vadd.f32 %v2739, %v2851
        %2853 = vmatmul.f32.gmra.mxu0 %v2468
        %v2854 = vpop.f32.mrf.mxu0
        %v2855 = vadd.f32 %v2742, %v2854
        %2856 = vmatmul.f32.gmra.mxu0 %v2474
        %v2857 = vpop.f32.mrf.mxu0
        %v2858 = vadd.f32 %v2745, %v2857
        %2859 = vmatmul.f32.gmra.mxu0 %v2480
        %v2860 = vpop.f32.mrf.mxu0
        %v2861 = vadd.f32 %v2748, %v2860
        %2862 = vmatmul.f32.gmra.mxu0 %v2486
        %v2863 = vpop.f32.mrf.mxu0
        %v2864 = vadd.f32 %v2751, %v2863
        %2865 = vmatmul.f32.gmra.mxu0 %v2492
        %v2866 = vpop.f32.mrf.mxu0
        %v2867 = vadd.f32 %v2754, %v2866
        %2868 = vmatmul.f32.gmra.mxu0 %v2498
        %v2869 = vpop.f32.mrf.mxu0
        %v2870 = vadd.f32 %v2757, %v2869
        %2871 = vmatmul.f32.gmra.mxu0 %v2504
        %v2872 = vpop.f32.mrf.mxu0
        %v2873 = vadd.f32 %v2760, %v2872
        %2874 = vmatmul.f32.gmra.mxu0 %v2510
        %v2875 = vpop.f32.mrf.mxu0
        %v2876 = vadd.f32 %v2763, %v2875
        %2877 = vmatmul.f32.gmra.mxu0 %v2516
        %v2878 = vpop.f32.mrf.mxu0
        %v2879 = vadd.f32 %v2766, %v2878
        %2880 = vmatmul.f32.gmra.mxu0 %v2522
        %v2881 = vpop.f32.mrf.mxu0
        %v2882 = vadd.f32 %v2769, %v2881
        %2883 = vmatmul.f32.gmra.mxu0 %v2528
        %v2884 = vpop.f32.mrf.mxu0
        %v2885 = vadd.f32 %v2772, %v2884
        %2886 = vmatmul.f32.gmra.mxu0 %v2534
        %v2887 = vpop.f32.mrf.mxu0
        %v2888 = vadd.f32 %v2775, %v2887
        %2889 = vdwg.mxu0
        %2890 = vmatpush.msra.mxu0 0.0
        %2891 = vmatpush.msra.mxu0 0.0
        %2892 = vmatpush.msra.mxu0 0.0
        %2893 = vmatpush.msra.mxu0 0.0
        %2894 = vmatpush.msra.mxu0 0.0
        %2895 = vmatpush.msra.mxu0 0.0
        %2896 = vmatpush.msra.mxu0 0.0
        %2897 = vmatpush.msra.mxu0 0.0
        %2898 = vmatpush.msra.mxu0 0.0
        %2899 = vmatpush.msra.mxu0 0.0
        %2900 = vmatpush.msra.mxu0 0.0
        %2901 = vmatpush.msra.mxu0 0.0
        %2902 = vmatpush.msra.mxu0 %v2270
        %2903 = vmatpush.msra.mxu0 %v2269
        %2904 = vmatpush.msra.mxu0 %v2268
        %2905 = vmatpush.msra.mxu0 %v2267
        %2906 = vmatmul.f32.gmra.mxu0 %v2600
        %v2907 = vpop.f32.mrf.mxu0
        %v2908 = vadd.f32 %v2795, %v2907
        %2909 = vmatmul.f32.gmra.mxu0 %v2602
        %v2910 = vpop.f32.mrf.mxu0
        %v2911 = vadd.f32 %v2798, %v2910
        %2912 = vmatmul.f32.gmra.mxu0 %v2604
        %v2913 = vpop.f32.mrf.mxu0
        %v2914 = vadd.f32 %v2801, %v2913
        %2915 = vmatmul.f32.gmra.mxu0 %v2606
        %v2916 = vpop.f32.mrf.mxu0
        %v2917 = vadd.f32 %v2804, %v2916
        %2918 = vmatmul.f32.gmra.mxu0 %v2608
        %v2919 = vpop.f32.mrf.mxu0
        %v2920 = vadd.f32 %v2807, %v2919
        %2921 = vmatmul.f32.gmra.mxu0 %v2610
        %v2922 = vpop.f32.mrf.mxu0
        %v2923 = vadd.f32 %v2810, %v2922
        %2924 = vmatmul.f32.gmra.mxu0 %v2612
        %v2925 = vpop.f32.mrf.mxu0
        %v2926 = vadd.f32 %v2813, %v2925
        %2927 = vmatmul.f32.gmra.mxu0 %v2614
        %v2928 = vpop.f32.mrf.mxu0
        %v2929 = vadd.f32 %v2816, %v2928
        %2930 = vmatmul.f32.gmra.mxu0 %v2616
        %v2931 = vpop.f32.mrf.mxu0
        %v2932 = vadd.f32 %v2819, %v2931
        %2933 = vmatmul.f32.gmra.mxu0 %v2618
        %v2934 = vpop.f32.mrf.mxu0
        %v2935 = vadd.f32 %v2822, %v2934
        %2936 = vmatmul.f32.gmra.mxu0 %v2620
        %v2937 = vpop.f32.mrf.mxu0
        %v2938 = vadd.f32 %v2825, %v2937
        %2939 = vmatmul.f32.gmra.mxu0 %v2622
        %v2940 = vpop.f32.mrf.mxu0
        %v2941 = vadd.f32 %v2828, %v2940
        %2942 = vmatmul.f32.gmra.mxu0 %v2624
        %v2943 = vpop.f32.mrf.mxu0
        %v2944 = vadd.f32 %v2831, %v2943
        %2945 = vmatmul.f32.gmra.mxu0 %v2626
        %v2946 = vpop.f32.mrf.mxu0
        %v2947 = vadd.f32 %v2834, %v2946
        %2948 = vmatmul.f32.gmra.mxu0 %v2628
        %v2949 = vpop.f32.mrf.mxu0
        %v2950 = vadd.f32 %v2837, %v2949
        %2951 = vmatmul.f32.gmra.mxu0 %v2630
        %v2952 = vpop.f32.mrf.mxu0
        %v2953 = vadd.f32 %v2840, %v2952
        %2954 = vmatmul.f32.gmra.mxu0 %v2632
        %v2955 = vpop.f32.mrf.mxu0
        %v2956 = vadd.f32 %v2843, %v2955
        %2957 = vmatmul.f32.gmra.mxu0 %v2634
        %v2958 = vpop.f32.mrf.mxu0
        %v2959 = vadd.f32 %v2846, %v2958
        %2960 = vmatmul.f32.gmra.mxu0 %v2636
        %v2961 = vpop.f32.mrf.mxu0
        %v2962 = vadd.f32 %v2849, %v2961
        %2963 = vmatmul.f32.gmra.mxu0 %v2638
        %v2964 = vpop.f32.mrf.mxu0
        %v2965 = vadd.f32 %v2852, %v2964
        %2966 = vmatmul.f32.gmra.mxu0 %v2640
        %v2967 = vpop.f32.mrf.mxu0
        %v2968 = vadd.f32 %v2855, %v2967
        %2969 = vmatmul.f32.gmra.mxu0 %v2642
        %v2970 = vpop.f32.mrf.mxu0
        %v2971 = vadd.f32 %v2858, %v2970
        %2972 = vmatmul.f32.gmra.mxu0 %v2644
        %v2973 = vpop.f32.mrf.mxu0
        %v2974 = vadd.f32 %v2861, %v2973
        %2975 = vmatmul.f32.gmra.mxu0 %v2646
        %v2976 = vpop.f32.mrf.mxu0
        %v2977 = vadd.f32 %v2864, %v2976
        %2978 = vmatmul.f32.gmra.mxu0 %v2648
        %v2979 = vpop.f32.mrf.mxu0
        %v2980 = vadd.f32 %v2867, %v2979
        %2981 = vmatmul.f32.gmra.mxu0 %v2650
        %v2982 = vpop.f32.mrf.mxu0
        %v2983 = vadd.f32 %v2870, %v2982
        %2984 = vmatmul.f32.gmra.mxu0 %v2652
        %v2985 = vpop.f32.mrf.mxu0
        %v2986 = vadd.f32 %v2873, %v2985
        %2987 = vmatmul.f32.gmra.mxu0 %v2654
        %v2988 = vpop.f32.mrf.mxu0
        %v2989 = vadd.f32 %v2876, %v2988
        %2990 = vmatmul.f32.gmra.mxu0 %v2656
        %v2991 = vpop.f32.mrf.mxu0
        %v2992 = vadd.f32 %v2879, %v2991
        %2993 = vmatmul.f32.gmra.mxu0 %v2658
        %v2994 = vpop.f32.mrf.mxu0
        %v2995 = vadd.f32 %v2882, %v2994
        %2996 = vmatmul.f32.gmra.mxu0 %v2660
        %v2997 = vpop.f32.mrf.mxu0
        %v2998 = vadd.f32 %v2885, %v2997
        %2999 = vmatmul.f32.gmra.mxu0 %v2662
        %v3000 = vpop.f32.mrf.mxu0
        %v3001 = vadd.f32 %v2888, %v3000
        %3002 = vdwg.mxu0
        %v3003 = vmax.f32 %v2908, 0.0
        %v3004 = vmax.f32 %v2911, 0.0
        %v3005 = vmax.f32 %v2914, 0.0
        %v3006 = vmax.f32 %v2917, 0.0
        %v3007 = vmax.f32 %v2920, 0.0
        %v3008 = vmax.f32 %v2923, 0.0
        %v3009 = vmax.f32 %v2926, 0.0
        %v3010 = vmax.f32 %v2929, 0.0
        %v3011 = vmax.f32 %v2932, 0.0
        %v3012 = vmax.f32 %v2935, 0.0
        %v3013 = vmax.f32 %v2938, 0.0
        %v3014 = vmax.f32 %v2941, 0.0
        %v3015 = vmax.f32 %v2944, 0.0
        %v3016 = vmax.f32 %v2947, 0.0
        %v3017 = vmax.f32 %v2950, 0.0
        %v3018 = vmax.f32 %v2953, 0.0
        %v3019 = vmax.f32 %v2956, 0.0
        %v3020 = vmax.f32 %v2959, 0.0
        %v3021 = vmax.f32 %v2962, 0.0
        %v3022 = vmax.f32 %v2965, 0.0
        %v3023 = vmax.f32 %v2968, 0.0
        %v3024 = vmax.f32 %v2971, 0.0
        %v3025 = vmax.f32 %v2974, 0.0
        %v3026 = vmax.f32 %v2977, 0.0
        %v3027 = vmax.f32 %v2980, 0.0
        %v3028 = vmax.f32 %v2983, 0.0
        %v3029 = vmax.f32 %v2986, 0.0
        %v3030 = vmax.f32 %v2989, 0.0
        %v3031 = vmax.f32 %v2992, 0.0
        %v3032 = vmax.f32 %v2995, 0.0
        %v3033 = vmax.f32 %v2998, 0.0
        %v3034 = vmax.f32 %v3001, 0.0
        %v3035 = vld [vmem:[%s5] sm:$0xff]
        %v3036 = vld [vmem:[%s5 + $0x8] sm:$0xff]
        %v3037 = vld [vmem:[%s5 + $0x10] sm:$0xff]
        %v3038 = vld [vmem:[%s5 + $0x18] sm:$0xff]
        %v3039 = vld [vmem:[%s6] sm:$0x1]
        %v3041 = vperm.slane %v3039, 0
        %v3044 = vsel %vm2034, %v3003, 0
        %v3047 = vsel %vm2034, %v3004, 0
        %v3050 = vsel %vm2034, %v3005, 0
        %v3053 = vsel %vm2034, %v3006, 0
        %v3056 = vsel %vm2034, %v3007, 0
        %v3059 = vsel %vm2034, %v3008, 0
        %v3062 = vsel %vm2034, %v3009, 0
        %v3065 = vsel %vm2034, %v3010, 0
        %v3068 = vsel %vm2034, %v3011, 0
        %v3071 = vsel %vm2034, %v3012, 0
        %v3074 = vsel %vm2034, %v3013, 0
        %v3077 = vsel %vm2034, %v3014, 0
        %v3080 = vsel %vm2034, %v3015, 0
        %v3083 = vsel %vm2034, %v3016, 0
        %v3086 = vsel %vm2034, %v3017, 0
        %v3089 = vsel %vm2034, %v3018, 0
        %v3092 = vsel %vm2034, %v3019, 0
        %v3095 = vsel %vm2034, %v3020, 0
        %v3098 = vsel %vm2034, %v3021, 0
        %v3101 = vsel %vm2034, %v3022, 0
        %v3104 = vsel %vm2034, %v3023, 0
        %v3107 = vsel %vm2034, %v3024, 0
        %v3110 = vsel %vm2034, %v3025, 0
        %v3113 = vsel %vm2034, %v3026, 0
        %v3116 = vsel %vm2034, %v3027, 0
        %v3119 = vsel %vm2034, %v3028, 0
        %v3122 = vsel %vm2034, %v3029, 0
        %v3125 = vsel %vm2034, %v3030, 0
        %v3128 = vsel %vm2034, %v3031, 0
        %v3131 = vsel %vm2034, %v3032, 0
        %v3134 = vsel %vm2034, %v3033, 0
        %v3137 = vsel %vm2034, %v3034, 0
        %3139 = vmatpush.msra.mxu0 0.0
        %3140 = vmatpush.msra.mxu0 0.0
        %3141 = vmatpush.msra.mxu0 0.0
        %3142 = vmatpush.msra.mxu0 0.0
        %3143 = vmatpush.msra.mxu0 0.0
        %3144 = vmatpush.msra.mxu0 0.0
        %3145 = vmatpush.msra.mxu0 0.0
        %3146 = vmatpush.msra.mxu0 0.0
        %3147 = vmatpush.msra.mxu0 0.0
        %3148 = vmatpush.msra.mxu0 0.0
        %3149 = vmatpush.msra.mxu0 0.0
        %3150 = vmatpush.msra.mxu0 0.0
        %3151 = vmatpush.msra.mxu0 %v3038
        %3152 = vmatpush.msra.mxu0 %v3037
        %3153 = vmatpush.msra.mxu0 %v3036
        %3154 = vmatpush.msra.mxu0 %v3035
        %3155 = vmatmul.f32.gmra.mxu0 %v3044
        %v3156 = vpop.f32.mrf.mxu0
        %v3157 = vadd.f32 %v3041, %v3156
        %3158 = vmatmul.f32.gmra.mxu0 %v3047
        %v3159 = vpop.f32.mrf.mxu0
        %v3160 = vadd.f32 %v3041, %v3159
        %3161 = vmatmul.f32.gmra.mxu0 %v3050
        %v3162 = vpop.f32.mrf.mxu0
        %v3163 = vadd.f32 %v3041, %v3162
        %3164 = vmatmul.f32.gmra.mxu0 %v3053
        %v3165 = vpop.f32.mrf.mxu0
        %v3166 = vadd.f32 %v3041, %v3165
        %3167 = vmatmul.f32.gmra.mxu0 %v3056
        %v3168 = vpop.f32.mrf.mxu0
        %v3169 = vadd.f32 %v3041, %v3168
        %3170 = vmatmul.f32.gmra.mxu0 %v3059
        %v3171 = vpop.f32.mrf.mxu0
        %v3172 = vadd.f32 %v3041, %v3171
        %3173 = vmatmul.f32.gmra.mxu0 %v3062
        %v3174 = vpop.f32.mrf.mxu0
        %v3175 = vadd.f32 %v3041, %v3174
        %3176 = vmatmul.f32.gmra.mxu0 %v3065
        %v3177 = vpop.f32.mrf.mxu0
        %v3178 = vadd.f32 %v3041, %v3177
        %3179 = vmatmul.f32.gmra.mxu0 %v3068
        %v3180 = vpop.f32.mrf.mxu0
        %v3181 = vadd.f32 %v3041, %v3180
        %3182 = vmatmul.f32.gmra.mxu0 %v3071
        %v3183 = vpop.f32.mrf.mxu0
        %v3184 = vadd.f32 %v3041, %v3183
        %3185 = vmatmul.f32.gmra.mxu0 %v3074
        %v3186 = vpop.f32.mrf.mxu0
        %v3187 = vadd.f32 %v3041, %v3186
        %3188 = vmatmul.f32.gmra.mxu0 %v3077
        %v3189 = vpop.f32.mrf.mxu0
        %v3190 = vadd.f32 %v3041, %v3189
        %3191 = vmatmul.f32.gmra.mxu0 %v3080
        %v3192 = vpop.f32.mrf.mxu0
        %v3193 = vadd.f32 %v3041, %v3192
        %3194 = vmatmul.f32.gmra.mxu0 %v3083
        %v3195 = vpop.f32.mrf.mxu0
        %v3196 = vadd.f32 %v3041, %v3195
        %3197 = vmatmul.f32.gmra.mxu0 %v3086
        %v3198 = vpop.f32.mrf.mxu0
        %v3199 = vadd.f32 %v3041, %v3198
        %3200 = vmatmul.f32.gmra.mxu0 %v3089
        %v3201 = vpop.f32.mrf.mxu0
        %v3202 = vadd.f32 %v3041, %v3201
        %3203 = vmatmul.f32.gmra.mxu0 %v3092
        %v3204 = vpop.f32.mrf.mxu0
        %v3205 = vadd.f32 %v3041, %v3204
        %3206 = vmatmul.f32.gmra.mxu0 %v3095
        %v3207 = vpop.f32.mrf.mxu0
        %v3208 = vadd.f32 %v3041, %v3207
        %3209 = vmatmul.f32.gmra.mxu0 %v3098
        %v3210 = vpop.f32.mrf.mxu0
        %v3211 = vadd.f32 %v3041, %v3210
        %3212 = vmatmul.f32.gmra.mxu0 %v3101
        %v3213 = vpop.f32.mrf.mxu0
        %v3214 = vadd.f32 %v3041, %v3213
        %3215 = vmatmul.f32.gmra.mxu0 %v3104
        %v3216 = vpop.f32.mrf.mxu0
        %v3217 = vadd.f32 %v3041, %v3216
        %3218 = vmatmul.f32.gmra.mxu0 %v3107
        %v3219 = vpop.f32.mrf.mxu0
        %v3220 = vadd.f32 %v3041, %v3219
        %3221 = vmatmul.f32.gmra.mxu0 %v3110
        %v3222 = vpop.f32.mrf.mxu0
        %v3223 = vadd.f32 %v3041, %v3222
        %3224 = vmatmul.f32.gmra.mxu0 %v3113
        %v3225 = vpop.f32.mrf.mxu0
        %v3226 = vadd.f32 %v3041, %v3225
        %3227 = vmatmul.f32.gmra.mxu0 %v3116
        %v3228 = vpop.f32.mrf.mxu0
        %v3229 = vadd.f32 %v3041, %v3228
        %3230 = vmatmul.f32.gmra.mxu0 %v3119
        %v3231 = vpop.f32.mrf.mxu0
        %v3232 = vadd.f32 %v3041, %v3231
        %3233 = vmatmul.f32.gmra.mxu0 %v3122
        %v3234 = vpop.f32.mrf.mxu0
        %v3235 = vadd.f32 %v3041, %v3234
        %3236 = vmatmul.f32.gmra.mxu0 %v3125
        %v3237 = vpop.f32.mrf.mxu0
        %v3238 = vadd.f32 %v3041, %v3237
        %3239 = vmatmul.f32.gmra.mxu0 %v3128
        %v3240 = vpop.f32.mrf.mxu0
        %v3241 = vadd.f32 %v3041, %v3240
        %3242 = vmatmul.f32.gmra.mxu0 %v3131
        %v3243 = vpop.f32.mrf.mxu0
        %v3244 = vadd.f32 %v3041, %v3243
        %3245 = vmatmul.f32.gmra.mxu0 %v3134
        %v3246 = vpop.f32.mrf.mxu0
        %v3247 = vadd.f32 %v3041, %v3246
        %3248 = vmatmul.f32.gmra.mxu0 %v3137
        %v3249 = vpop.f32.mrf.mxu0
        %v3250 = vadd.f32 %v3041, %v3249
        %3251 = vdwg.mxu0
        %v3252 = vadd.f32 %v3157, %v307
        %v3253 = vadd.f32 %v3160, %v308
        %v3254 = vadd.f32 %v3163, %v309
        %v3255 = vadd.f32 %v3166, %v310
        %v3256 = vadd.f32 %v3169, %v311
        %v3257 = vadd.f32 %v3172, %v312
        %v3258 = vadd.f32 %v3175, %v313
        %v3259 = vadd.f32 %v3178, %v314
        %v3260 = vadd.f32 %v3181, %v315
        %v3261 = vadd.f32 %v3184, %v316
        %v3262 = vadd.f32 %v3187, %v317
        %v3263 = vadd.f32 %v3190, %v318
        %v3264 = vadd.f32 %v3193, %v319
        %v3265 = vadd.f32 %v3196, %v320
        %v3266 = vadd.f32 %v3199, %v321
        %v3267 = vadd.f32 %v3202, %v322
        %v3268 = vadd.f32 %v3205, %v323
        %v3269 = vadd.f32 %v3208, %v324
        %v3270 = vadd.f32 %v3211, %v325
        %v3271 = vadd.f32 %v3214, %v326
        %v3272 = vadd.f32 %v3217, %v327
        %v3273 = vadd.f32 %v3220, %v328
        %v3274 = vadd.f32 %v3223, %v329
        %v3275 = vadd.f32 %v3226, %v330
        %v3276 = vadd.f32 %v3229, %v331
        %v3277 = vadd.f32 %v3232, %v332
        %v3278 = vadd.f32 %v3235, %v333
        %v3279 = vadd.f32 %v3238, %v334
        %v3280 = vadd.f32 %v3241, %v335
        %v3281 = vadd.f32 %v3244, %v336
        %v3282 = vadd.f32 %v3247, %v337
        %v3283 = vadd.f32 %v3250, %v338
        %v3284 = vmax.f32 %v3252, 0.0
        %v3285 = vmax.f32 %v3253, 0.0
        %v3286 = vmax.f32 %v3254, 0.0
        %v3287 = vmax.f32 %v3255, 0.0
        %v3288 = vmax.f32 %v3256, 0.0
        %v3289 = vmax.f32 %v3257, 0.0
        %v3290 = vmax.f32 %v3258, 0.0
        %v3291 = vmax.f32 %v3259, 0.0
        %v3292 = vmax.f32 %v3260, 0.0
        %v3293 = vmax.f32 %v3261, 0.0
        %v3294 = vmax.f32 %v3262, 0.0
        %v3295 = vmax.f32 %v3263, 0.0
        %v3296 = vmax.f32 %v3264, 0.0
        %v3297 = vmax.f32 %v3265, 0.0
        %v3298 = vmax.f32 %v3266, 0.0
        %v3299 = vmax.f32 %v3267, 0.0
        %v3300 = vmax.f32 %v3268, 0.0
        %v3301 = vmax.f32 %v3269, 0.0
        %v3302 = vmax.f32 %v3270, 0.0
        %v3303 = vmax.f32 %v3271, 0.0
        %v3304 = vmax.f32 %v3272, 0.0
        %v3305 = vmax.f32 %v3273, 0.0
        %v3306 = vmax.f32 %v3274, 0.0
        %v3307 = vmax.f32 %v3275, 0.0
        %v3308 = vmax.f32 %v3276, 0.0
        %v3309 = vmax.f32 %v3277, 0.0
        %v3310 = vmax.f32 %v3278, 0.0
        %v3311 = vmax.f32 %v3279, 0.0
        %v3312 = vmax.f32 %v3280, 0.0
        %v3313 = vmax.f32 %v3281, 0.0
        %v3314 = vmax.f32 %v3282, 0.0
        %v3315 = vmax.f32 %v3283, 0.0
        %3316 = vst [vmem:[%s301] sm:$0xff] %v3284
        %3317 = vst [vmem:[%s301 + $0x8] sm:$0xff] %v3285
        %3318 = vst [vmem:[%s301 + $0x10] sm:$0xff] %v3286
        %3319 = vst [vmem:[%s301 + $0x18] sm:$0xff] %v3287
        %3320 = vst [vmem:[%s301 + $0x20] sm:$0xff] %v3288
        %3321 = vst [vmem:[%s301 + $0x28] sm:$0xff] %v3289
        %3322 = vst [vmem:[%s301 + $0x30] sm:$0xff] %v3290
        %3323 = vst [vmem:[%s301 + $0x38] sm:$0xff] %v3291
        %3324 = vst [vmem:[%s301 + $0x40] sm:$0xff] %v3292
        %3325 = vst [vmem:[%s301 + $0x48] sm:$0xff] %v3293
        %3326 = vst [vmem:[%s301 + $0x50] sm:$0xff] %v3294
        %3327 = vst [vmem:[%s301 + $0x58] sm:$0xff] %v3295
        %3328 = vst [vmem:[%s301 + $0x60] sm:$0xff] %v3296
        %3329 = vst [vmem:[%s301 + $0x68] sm:$0xff] %v3297
        %3330 = vst [vmem:[%s301 + $0x70] sm:$0xff] %v3298
        %3331 = vst [vmem:[%s301 + $0x78] sm:$0xff] %v3299
        %3332 = vst [vmem:[%s301 + $0x80] sm:$0xff] %v3300
        %3333 = vst [vmem:[%s301 + $0x88] sm:$0xff] %v3301
        %3334 = vst [vmem:[%s301 + $0x90] sm:$0xff] %v3302
        %3335 = vst [vmem:[%s301 + $0x98] sm:$0xff] %v3303
        %3336 = vst [vmem:[%s301 + $0xa0] sm:$0xff] %v3304
        %3337 = vst [vmem:[%s301 + $0xa8] sm:$0xff] %v3305
        %3338 = vst [vmem:[%s301 + $0xb0] sm:$0xff] %v3306
        %3339 = vst [vmem:[%s301 + $0xb8] sm:$0xff] %v3307
        %3340 = vst [vmem:[%s301 + $0xc0] sm:$0xff] %v3308
        %3341 = vst [vmem:[%s301 + $0xc8] sm:$0xff] %v3309
        %3342 = vst [vmem:[%s301 + $0xd0] sm:$0xff] %v3310
        %3343 = vst [vmem:[%s301 + $0xd8] sm:$0xff] %v3311
        %3344 = vst [vmem:[%s301 + $0xe0] sm:$0xff] %v3312
        %3345 = vst [vmem:[%s301 + $0xe8] sm:$0xff] %v3313
        %3346 = vst [vmem:[%s301 + $0xf0] sm:$0xff] %v3314
        %3347 = vst [vmem:[%s301 + $0xf8] sm:$0xff] %v3315
        %s3348 = sand.u32 %s183, 1
        %s3349 = scalar_lea.sflag [#allocation4], %s3348
        %s3350 = sand.u32 %s183, 1
        %s3351 = smul.addr %s3350, 256
        %s3352 = scalar_lea.vmem [#allocation7], %s3351
        // Predicated region
        $region57: #{tpu_custom_call.1} parent=47 // pred_check
          %p3353 = pneg %p193
        $region58: #{tpu_custom_call.1} parent=47 // pred_check_branch
          %3355 = sbr.rel (%p3353) target = $region60
        $region59: #{tpu_custom_call.1} parent=47 // pred_region
          %3357 = vsyncadd %s3349, 0
          %s3358 = smul.addr %s23, 32
          %s3359 = smul.addr %s3358, 8
          %s3360 = scalar_lea.hbm %s7, %s3359
          %s3361 = sshll.u32 %s3352, 4
          %s3362 = int_to_ptr.vmem [resolvable:$true] %s3361
          %s3363 = sshll.u32 %s3360, 4
          %s3364 = int_to_ptr.hbm [resolvable:$true] %s3363
          %3369 = dma.vmem_to_hbm [thread:$0]  %s3362, 4096, %s3364, %s3349, 128, 128, 8
        $region60: #{tpu_custom_call.1} parent=47 // pred_fallthru
          _
      $region48: #{tpu_custom_call.1} parent=5 // pred_fallthru
        _
      %p3370 = scmp.le.s32.totalorder 2, %s18
      // Predicated region
      $region61: #{tpu_custom_call.1} parent=5 // pred_check
        %p3371 = pneg %p3370
      $region62: #{tpu_custom_call.1} parent=5 // pred_check_branch
        %3373 = sbr.rel (%p3371) target = $region64
      $region63: #{tpu_custom_call.1} parent=5 // pred_region
        %s3374 = ssub.s32 %s18, 2
        // Predicated region
        $region65: #{tpu_custom_call.1} parent=63 // pred_check
          %p3375 = pneg %p199
        $region66: #{tpu_custom_call.1} parent=63 // pred_check_branch
          %3377 = sbr.rel (%p3375) target = $region68
        $region67: #{tpu_custom_call.1} parent=63 // pred_region
          %s3378 = sand.u32 %s184, 1
          %s3379 = scalar_lea.sflag [#allocation4], %s3378
          %s3380 = sand.u32 %s184, 1
          %s3381 = smul.addr %s3380, 256
          %s3382 = scalar_lea.vmem [#allocation7], %s3381
          %3384 = dma.done %s3379, 4096
        $region68: #{tpu_custom_call.1} parent=63 // pred_fallthru
          _
      $region64: #{tpu_custom_call.1} parent=5 // pred_fallthru
        _
    $region6: #{tpu_custom_call.1} parent=1 // loop_footer
      %s22 = sadd.s32 1, %s18
    $region7: #{tpu_custom_call.1} parent=1 // loop_footer_branch
      %17 = sbr.rel target = $region3
    $region8: #{tpu_custom_call.1} parent=1 // loop_exit
      _
    %3385 = vsyncpa [#allocation3], 1
    %s3386 = scalar_lea.sflag [#allocation3], 1
    %3387 = vsyncpa %s3386, 1
    %3388 = vsyncpa [#allocation6], 1
    %3389 = vsyncpa [#allocation4], 1
    %s3390 = scalar_lea.sflag [#allocation4], 1
    %3391 = vsyncpa %s3390, 1

</llo_original>
